<compile_context>
chip_gen: v6e
topology: v6e:2x2x1
jax: 0.10.0
libtpu: 0.0.40
codegen_flags: <defaults>
</compile_context>

<pallas_src>
import numpy as np
import jax
import jax.numpy as jnp
from jax import lax
from jax.experimental import pallas as pl
from jax.experimental.pallas import tpu as pltpu


# Matmul operand dtype (accumulation is always f32 via preferred_element_type).
MM_DTYPE = jnp.bfloat16
# Conservative VMEM cap: fits v7x's 64 MiB physical VMEM, well under v5e/v6e 128 MiB.
_VMEM_LIMIT_BYTES = 48 * 1024 * 1024


# ----------------------- kernel A: LSTM recurrence + TPHead -------------------
def make_recurrence_kernel(nlayers, seq, batch, nhid, mm_dtype):
    n = seq * batch

    def kernel(*refs):
        emb_ref, h0_ref, c0_ref = refs[0:3]
        pos = 3
        lstm_refs = []
        for _ in range(nlayers):
            lstm_refs.append((refs[pos], refs[pos + 1], refs[pos + 2]))
            pos += 3
        wtp_ref, btp_ref = refs[pos], refs[pos + 1]
        pos += 2
        y_ref, tp_ref, hT_ref, cT_ref = refs[pos:pos + 4]
        pos += 4
        xg_sc = refs[pos]  # (seq*batch, 4*nhid) f32 VMEM scratch

        ninp = emb_ref.shape[-1]
        for layer in range(nlayers):
            wih_ref, whh_ref, b_ref = lstm_refs[layer]
            if layer == 0:
                x = emb_ref[...].reshape(n, ninp)
            else:
                x = y_ref[...]  # previous layer's activations (already in VMEM)

            # Hoisted input projection with fused bias: one big bf16 MXU matmul per
            # layer, stored to scratch so the unrolled time loop only holds one
            # (batch, 4*nhid) slice live at a time.
            xg_sc[...] = (
                jnp.dot(x.astype(mm_dtype), wih_ref[...].astype(mm_dtype),
                        preferred_element_type=jnp.float32) + b_ref[...])

            whh = whh_ref[...].astype(mm_dtype)  # hoisted cast, reused every step
            h = h0_ref[layer]
            c = c0_ref[layer]
            # seq is small & static -> fully unrolled (static slices / stores).
            # TODO(synk): for long sequences switch to lax.fori_loop + pl.ds slices.
            for t in range(seq):
                gates = xg_sc[t * batch:(t + 1) * batch, :] + jnp.dot(
                    h.astype(mm_dtype), whh, preferred_element_type=jnp.float32)
                if nhid >= 128:
                    # Slice before the nonlinearity: 4*nhid EUP ops/step, not 8*nhid.
                    if_g = jax.nn.sigmoid(gates[:, :2 * nhid])
                    i_g = if_g[:, :nhid]
                    f_g = if_g[:, nhid:]
                    g_g = jnp.tanh(gates[:, 2 * nhid:3 * nhid])
                    o_g = jax.nn.sigmoid(gates[:, 3 * nhid:])
                else:
                    # Toy nhid: quarters are sub-lane-width, full-vreg passes cheaper.
                    sg = jax.nn.sigmoid(gates)
                    th = jnp.tanh(gates)
                    i_g = sg[:, 0 * nhid:1 * nhid]
                    f_g = sg[:, 1 * nhid:2 * nhid]
                    g_g = th[:, 2 * nhid:3 * nhid]
                    o_g = sg[:, 3 * nhid:4 * nhid]
                c = f_g * c + i_g * g_g
                h = o_g * jnp.tanh(c)
                # Write straight into the output slab (no hs list / concatenate).
                y_ref[t * batch:(t + 1) * batch, :] = h
            hT_ref[layer] = h
            cT_ref[layer] = c

        # TPHead is tiny (nclasses ~ 1) -> keep f32, compute once on the final slab.
        tp_ref[...] = (jnp.dot(y_ref[...], wtp_ref[...],
                               preferred_element_type=jnp.float32) + btp_ref[...])

    return kernel


# --------------------------- kernel B: vocab decoder ---------------------------
def make_decoder_kernel(inv_temp):
    def kernel(y_ref, w_ref, b_ref, o_ref):
        # bf16 slab x bf16 weight tile, f32 accumulate, bias + temperature fused.
        o_ref[...] = (jnp.dot(y_ref[...], w_ref[...],
                              preferred_element_type=jnp.float32)
                      + b_ref[...]) * inv_temp
    return kernel


def _pick_vocab_tile(nhid, n, ntoken):
    """Largest lane-dense vocab tile that fits a conservative VMEM budget."""
    budget = 40 * 1024 * 1024
    ntok_ceil = ((ntoken + 127) // 128) * 128
    for tn in (2048, 1024, 512, 256, 128):
        est = (2 * nhid * tn * 2      # double-buffered bf16 weight tile
               + 2 * n * tn * 4       # double-buffered f32 output tile
               + 2 * tn * 4           # bias tile
               + 2 * n * nhid * 2)    # activation slab (constant block)
        if est <= budget:
            return min(tn, ntok_ceil)
    return min(128, ntok_ceil)


# ------------------------------ model wrapper ---------------------------------
def rnn_model_forward(tokens, hidden, params, temperature=1.0):
    """Equivalent of RNNModel.forward(input, hidden, temperature) in eval mode."""
    h0, c0 = hidden  # each (nlayers, batch, nhid)
    # Embedding lookup kept in plain JAX (gather glue).
    emb = jnp.take(params["encoder_w"], tokens, axis=0)  # (seq, batch, ninp)

    seq, batch, _ = emb.shape
    nlayers, _, nhid = h0.shape
    dec_w_t, dec_b = params["decoder_w_t"], params["decoder_b"]
    tp_w_t, tp_b = params["tphead_w_t"], params["tphead_b"]
    ntoken = dec_w_t.shape[1]
    nclasses = tp_w_t.shape[1]
    n = seq * batch

    # ---------------- call A: recurrence + TPHead + final states ---------------
    rec_kernel = make_recurrence_kernel(nlayers, seq, batch, nhid, MM_DTYPE)

    def full(a):
        nd = a.ndim
        return pl.BlockSpec(a.shape, lambda i, _nd=nd: (0,) * _nd)

    in_specs = [full(emb), full(h0), full(c0)]
    operands = [emb, h0, c0]
    for (wih_t, whh_t, b) in params["lstm"]:
        in_specs += [full(wih_t), full(whh_t), full(b)]
        operands += [wih_t, whh_t, b]
    in_specs += [full(tp_w_t), full(tp_b)]
    operands += [tp_w_t, tp_b]

    rec_out_shape = (
        jax.ShapeDtypeStruct((n, nhid), jnp.float32),               # activation slab
        jax.ShapeDtypeStruct((n, nclasses), jnp.float32),           # TPHead (flat)
        jax.ShapeDtypeStruct((nlayers, batch, nhid), jnp.float32),  # h_T
        jax.ShapeDtypeStruct((nlayers, batch, nhid), jnp.float32),  # c_T
    )
    rec_out_specs = (
        pl.BlockSpec((n, nhid), lambda i: (0, 0)),
        pl.BlockSpec((n, nclasses), lambda i: (0, 0)),
        pl.BlockSpec((nlayers, batch, nhid), lambda i: (0, 0, 0)),
        pl.BlockSpec((nlayers, batch, nhid), lambda i: (0, 0, 0)),
    )

    y_slab, tp2d, hT, cT = pl.pallas_call(
        rec_kernel,
        out_shape=rec_out_shape,
        grid_spec=pltpu.PrefetchScalarGridSpec(
            num_scalar_prefetch=0,
            grid=(1,),
            in_specs=in_specs,
            out_specs=rec_out_specs,
            scratch_shapes=[pltpu.VMEM((n, 4 * nhid), jnp.float32)],
        ),
        compiler_params=pltpu.CompilerParams(
            dimension_semantics=("arbitrary",),
            vmem_limit_bytes=_VMEM_LIMIT_BYTES),
    )(*operands)

    # ------------------------ call B: vocab-tiled decoder ----------------------
    tn = _pick_vocab_tile(nhid, n, ntoken)
    ntok_pad = ((ntoken + tn - 1) // tn) * tn
    w_bf = dec_w_t.astype(jnp.bfloat16)          # one-time cast; kernel streams bf16
    if ntok_pad != ntoken:
        # Pad to a lane-dense multiple of the tile; padded logits are sliced away.
        w_bf = jnp.pad(w_bf, ((0, 0), (0, ntok_pad - ntoken)))
        b_pad = jnp.pad(dec_b, ((0, 0), (0, ntok_pad - ntoken)))
    else:
        b_pad = dec_b
    y_bf = y_slab.astype(jnp.bfloat16)
    n_tiles = ntok_pad // tn

    dec_kernel = make_decoder_kernel(1.0 / float(temperature))
    # TODO(synk): pipeline_mode=pl.Buffered(1) on the constant slab input would save
    # one small buffer; the split already removed the large resident-weight issue.
    dec_pad = pl.pallas_call(
        dec_kernel,
        out_shape=jax.ShapeDtypeStruct((n, ntok_pad), jnp.float32),
        grid_spec=pltpu.PrefetchScalarGridSpec(
            num_scalar_prefetch=0,
            grid=(n_tiles,),
            in_specs=[pl.BlockSpec((n, nhid), lambda j: (0, 0)),   # slab (constant)
                      pl.BlockSpec((nhid, tn), lambda j: (0, j)),  # weight vocab tile
                      pl.BlockSpec((1, tn), lambda j: (0, j))],    # bias vocab tile
            out_specs=pl.BlockSpec((n, tn), lambda j: (0, j)),
        ),
        # Vocab tiles are independent -> "parallel" lets v7x shard across its 2 TCs.
        compiler_params=pltpu.CompilerParams(
            dimension_semantics=("parallel",),
            vmem_limit_bytes=_VMEM_LIMIT_BYTES),
    )(y_bf, w_bf, b_pad)

    decoded = dec_pad[:, :ntoken].reshape(seq, batch, ntoken)
    tpdecoded = tp2d.reshape(seq, batch, nclasses)
    return decoded, (hT, cT), tpdecoded


# --------------------------- parameter construction ---------------------------
def init_params(key, ntoken, ninp, nhid, nlayers, nclasses):
    initrange = 0.1
    stdv = 1.0 / np.sqrt(nhid)
    keys = jax.random.split(key, 3 + nlayers)

    enc_w = jax.random.uniform(keys[0], (ntoken, ninp), jnp.float32,
                               -initrange, initrange)
    dec_w = jax.random.uniform(keys[1], (ntoken, nhid), jnp.float32,
                               -initrange, initrange)
    dec_b = jnp.zeros((ntoken,), jnp.float32)
    tp_w = jax.random.uniform(keys[2], (nclasses, nhid), jnp.float32,
                              -initrange, initrange)
    tp_b = jnp.zeros((nclasses,), jnp.float32)

    lstm = []
    for layer_idx in range(nlayers):
        in_size = ninp if layer_idx == 0 else nhid
        kk = jax.random.split(keys[3 + layer_idx], 4)
        wih = jax.random.uniform(kk[0], (4 * nhid, in_size), jnp.float32, -stdv, stdv)
        whh = jax.random.uniform(kk[1], (4 * nhid, nhid), jnp.float32, -stdv, stdv)
        bih = jax.random.uniform(kk[2], (4 * nhid,), jnp.float32, -stdv, stdv)
        bhh = jax.random.uniform(kk[3], (4 * nhid,), jnp.float32, -stdv, stdv)
        lstm.append((wih.T, whh.T, (bih + bhh)[None, :]))

    return {
        "encoder_w": enc_w,
        "decoder_w_t": dec_w.T,           # (nhid, ntoken)
        "decoder_b": dec_b[None, :],      # (1, ntoken)
        "tphead_w_t": tp_w.T,             # (nhid, nclasses)
        "tphead_b": tp_b[None, :],        # (1, nclasses)
        "lstm": lstm,
    }


# ------------------------------ pure-JAX reference ----------------------------
def reference_forward(tokens, hidden, params, temperature=1.0):
    h0, c0 = hidden
    emb = jnp.take(params["encoder_w"], tokens, axis=0)
    x = emb
    hs, cs = [], []
    for layer_idx, (wih_t, whh_t, b) in enumerate(params["lstm"]):
        nhid = whh_t.shape[0]

        def step(carry, x_t, wih_t=wih_t, whh_t=whh_t, b=b, nhid=nhid):
            h, c = carry
            gates = jnp.dot(x_t, wih_t) + jnp.dot(h, whh_t) + b
            i = jax.nn.sigmoid(gates[:, 0 * nhid:1 * nhid])
            f = jax.nn.sigmoid(gates[:, 1 * nhid:2 * nhid])
            g = jnp.tanh(gates[:, 2 * nhid:3 * nhid])
            o = jax.nn.sigmoid(gates[:, 3 * nhid:4 * nhid])
            c_new = f * c + i * g
            h_new = o * jnp.tanh(c_new)
            return (h_new, c_new), h_new

        (hT, cT), ys = lax.scan(step, (h0[layer_idx], c0[layer_idx]), x)
        x = ys
        hs.append(hT)
        cs.append(cT)
    seq, batch, nhid = x.shape
    flat = x.reshape(seq * batch, nhid)
    dec = (jnp.dot(flat, params["decoder_w_t"]) + params["decoder_b"]) / temperature
    tp = jnp.dot(flat, params["tphead_w_t"]) + params["tphead_b"]
    return (dec.reshape(seq, batch, -1),
            (jnp.stack(hs, 0), jnp.stack(cs, 0)),
            tp.reshape(seq, batch, -1))


# ------------------------------------ main ------------------------------------
if __name__ == "__main__":
    ntoken, ninp, nhid, nlayers, nclasses = 64, 32, 32, 2, 1
    seq_len, batch = 8, 8
    temperature = 2.0

    root = jax.random.PRNGKey(0)
    k_param, k_tok = jax.random.split(root)
    params = init_params(k_param, ntoken, ninp, nhid, nlayers, nclasses)

    tokens = jax.random.randint(k_tok, (seq_len, batch), 0, ntoken, dtype=jnp.int32)
    # init_hidden(bsz) for LSTM: zeros.
    hidden0 = (jnp.zeros((nlayers, batch, nhid), jnp.float32),
               jnp.zeros((nlayers, batch, nhid), jnp.float32))

    decoded, (hT, cT), tpdecoded = rnn_model_forward(tokens, hidden0, params,
                                                     temperature=temperature)
    jax.block_until_ready((decoded, hT, cT, tpdecoded))

    # Sanity check against pure-JAX reference (kernel uses bf16 MXU operands with
    # f32 accumulation, hence the slightly loose tolerances).
    r_dec, (r_h, r_c), r_tp = reference_forward(tokens, hidden0, params,
                                                temperature=temperature)
    np.testing.assert_allclose(np.asarray(decoded), np.asarray(r_dec),
                               rtol=2e-2, atol=2e-2)
    np.testing.assert_allclose(np.asarray(tpdecoded), np.asarray(r_tp),
                               rtol=2e-2, atol=2e-2)
    np.testing.assert_allclose(np.asarray(hT), np.asarray(r_h), rtol=2e-2, atol=2e-2)
    np.testing.assert_allclose(np.asarray(cT), np.asarray(r_c), rtol=2e-2, atol=2e-2)

    assert decoded.shape == (seq_len, batch, ntoken)
    assert tpdecoded.shape == (seq_len, batch, nclasses)
    assert hT.shape == (nlayers, batch, nhid) and cT.shape == (nlayers, batch, nhid)

    print("KERNEL_OK")
</pallas_src>

<mosaic_0001>
module attributes {stable_mosaic.version = 11 : i64} {
  func.func @kernel(%arg0: i32, %arg1: memref<8x8x32xf32, #tpu.memory_space<vmem>>, %arg2: memref<2x8x32xf32, #tpu.memory_space<vmem>>, %arg3: memref<2x8x32xf32, #tpu.memory_space<vmem>>, %arg4: memref<32x128xf32, #tpu.memory_space<vmem>>, %arg5: memref<32x128xf32, #tpu.memory_space<vmem>>, %arg6: memref<1x128xf32, #tpu.memory_space<vmem>>, %arg7: memref<32x128xf32, #tpu.memory_space<vmem>>, %arg8: memref<32x128xf32, #tpu.memory_space<vmem>>, %arg9: memref<1x128xf32, #tpu.memory_space<vmem>>, %arg10: memref<32x1xf32, #tpu.memory_space<vmem>>, %arg11: memref<1x1xf32, #tpu.memory_space<vmem>>, %arg12: memref<64x32xf32, #tpu.memory_space<vmem>>, %arg13: memref<64x1xf32, #tpu.memory_space<vmem>>, %arg14: memref<2x8x32xf32, #tpu.memory_space<vmem>>, %arg15: memref<2x8x32xf32, #tpu.memory_space<vmem>>, %arg16: memref<64x128xf32, #tpu.memory_space<vmem>>) attributes {dimension_semantics = [#tpu.dimension_semantics<arbitrary>], iteration_bounds = array<i64: 1>, scalar_prefetch = 0 : i64, scratch_operands = 1 : i64, tpu.core_type = #tpu.core_type<tc>, window_params = [{pipeline_mode = #tpu.pipeline_mode<synchronous>, transform_indices = @transform_0, window_bounds = array<i64: 8, 8, 32>}, {pipeline_mode = #tpu.pipeline_mode<synchronous>, transform_indices = @transform_1, window_bounds = array<i64: 2, 8, 32>}, {pipeline_mode = #tpu.pipeline_mode<synchronous>, transform_indices = @transform_2, window_bounds = array<i64: 2, 8, 32>}, {pipeline_mode = #tpu.pipeline_mode<synchronous>, transform_indices = @transform_3, window_bounds = array<i64: 32, 128>}, {pipeline_mode = #tpu.pipeline_mode<synchronous>, transform_indices = @transform_4, window_bounds = array<i64: 32, 128>}, {pipeline_mode = #tpu.pipeline_mode<synchronous>, transform_indices = @transform_5, window_bounds = array<i64: 1, 128>}, {pipeline_mode = #tpu.pipeline_mode<synchronous>, transform_indices = @transform_6, window_bounds = array<i64: 32, 128>}, {pipeline_mode = #tpu.pipeline_mode<synchronous>, transform_indices = @transform_7, window_bounds = array<i64: 32, 128>}, {pipeline_mode = #tpu.pipeline_mode<synchronous>, transform_indices = @transform_8, window_bounds = array<i64: 1, 128>}, {pipeline_mode = #tpu.pipeline_mode<synchronous>, transform_indices = @transform_9, window_bounds = array<i64: 32, 1>}, {pipeline_mode = #tpu.pipeline_mode<synchronous>, transform_indices = @transform_10, window_bounds = array<i64: 1, 1>}, {pipeline_mode = #tpu.pipeline_mode<synchronous>, transform_indices = @transform_11, window_bounds = array<i64: 64, 32>}, {pipeline_mode = #tpu.pipeline_mode<synchronous>, transform_indices = @transform_12, window_bounds = array<i64: 64, 1>}, {pipeline_mode = #tpu.pipeline_mode<synchronous>, transform_indices = @transform_13, window_bounds = array<i64: 2, 8, 32>}, {pipeline_mode = #tpu.pipeline_mode<synchronous>, transform_indices = @transform_14, window_bounds = array<i64: 2, 8, 32>}]} {
    %c0 = arith.constant 0 : index
    %c0_0 = arith.constant 0 : index
    %c0_1 = arith.constant 0 : index
    %0 = vector.load %arg1[%c0, %c0_0, %c0_1] : memref<8x8x32xf32, #tpu.memory_space<vmem>>, vector<8x8x32xf32>
    %1 = vector.shape_cast %0 : vector<8x8x32xf32> to vector<64x32xf32>
    %2 = arith.truncf %1 : vector<64x32xf32> to vector<64x32xbf16>
    %c0_2 = arith.constant 0 : index
    %c0_3 = arith.constant 0 : index
    %3 = vector.load %arg4[%c0_2, %c0_3] : memref<32x128xf32, #tpu.memory_space<vmem>>, vector<32x128xf32>
    %4 = arith.truncf %3 : vector<32x128xf32> to vector<32x128xbf16>
    %cst = arith.constant dense<0.000000e+00> : vector<64x128xf32>
    %5 = tpu.matmul %2, %4, %cst {dimension_numbers = #tpu.dot_dimension_numbers<[1], [0], [0], [1], [0, 0, 1, 1], [], []>} : vector<64x32xbf16>, vector<32x128xbf16>, vector<64x128xf32> -> vector<64x128xf32>
    %c0_4 = arith.constant 0 : index
    %c0_5 = arith.constant 0 : index
    %6 = vector.load %arg6[%c0_4, %c0_5] : memref<1x128xf32, #tpu.memory_space<vmem>>, vector<1x128xf32>
    %7 = vector.broadcast %6 : vector<1x128xf32> to vector<64x128xf32>
    %8 = arith.addf %5, %7 : vector<64x128xf32>
    %c0_6 = arith.constant 0 : index
    %c0_7 = arith.constant 0 : index
    %9 = vector.load %arg16[%c0_6, %c0_7] : memref<64x128xf32, #tpu.memory_space<vmem>>, vector<64x128xf32>
    tpu.vector_store %arg16[%c0_6, %c0_7], %8 {strides = array<i32>} : memref<64x128xf32, #tpu.memory_space<vmem>>, vector<64x128xf32>,
    %c0_8 = arith.constant 0 : index
    %c0_9 = arith.constant 0 : index
    %10 = vector.load %arg5[%c0_8, %c0_9] : memref<32x128xf32, #tpu.memory_space<vmem>>, vector<32x128xf32>
    %11 = arith.truncf %10 : vector<32x128xf32> to vector<32x128xbf16>
    %c0_10 = arith.constant 0 : index
    %c0_11 = arith.constant 0 : index
    %c0_12 = arith.constant 0 : index
    %12 = vector.load %arg2[%c0_10, %c0_11, %c0_12] : memref<2x8x32xf32, #tpu.memory_space<vmem>>, vector<1x8x32xf32>
    %13 = vector.shape_cast %12 : vector<1x8x32xf32> to vector<8x32xf32>
    %c0_13 = arith.constant 0 : index
    %c0_14 = arith.constant 0 : index
    %c0_15 = arith.constant 0 : index
    %14 = vector.load %arg3[%c0_13, %c0_14, %c0_15] : memref<2x8x32xf32, #tpu.memory_space<vmem>>, vector<1x8x32xf32>
    %15 = vector.shape_cast %14 : vector<1x8x32xf32> to vector<8x32xf32>
    %c0_16 = arith.constant 0 : index
    %c0_17 = arith.constant 0 : index
    %16 = vector.load %arg16[%c0_16, %c0_17] : memref<64x128xf32, #tpu.memory_space<vmem>>, vector<8x128xf32>
    %17 = arith.truncf %13 : vector<8x32xf32> to vector<8x32xbf16>
    %cst_18 = arith.constant dense<0.000000e+00> : vector<8x128xf32>
    %18 = tpu.matmul %17, %11, %cst_18 {dimension_numbers = #tpu.dot_dimension_numbers<[1], [0], [0], [1], [0, 0, 1, 1], [], []>} : vector<8x32xbf16>, vector<32x128xbf16>, vector<8x128xf32> -> vector<8x128xf32>
    %19 = arith.addf %16, %18 : vector<8x128xf32>
    %20 = arith.negf %19 : vector<8x128xf32>
    %21 = math.exp %20 : vector<8x128xf32>
    %cst_19 = arith.constant 1.000000e+00 : f32
    %22 = vector.broadcast %cst_19 : f32 to vector<8x128xf32>
    %23 = arith.addf %22, %21 : vector<8x128xf32>
    %24 = arith.divf %22, %23 : vector<8x128xf32>
    %25 = math.tanh %19 : vector<8x128xf32>
    %26 = vector.extract_strided_slice %24 {offsets = [0, 0], sizes = [8, 32], strides = [1, 1]} : vector<8x128xf32> to vector<8x32xf32>
    %27 = vector.extract_strided_slice %24 {offsets = [0, 32], sizes = [8, 32], strides = [1, 1]} : vector<8x128xf32> to vector<8x32xf32>
    %28 = vector.extract_strided_slice %25 {offsets = [0, 64], sizes = [8, 32], strides = [1, 1]} : vector<8x128xf32> to vector<8x32xf32>
    %29 = vector.extract_strided_slice %24 {offsets = [0, 96], sizes = [8, 32], strides = [1, 1]} : vector<8x128xf32> to vector<8x32xf32>
    %30 = arith.mulf %27, %15 : vector<8x32xf32>
    %31 = arith.mulf %26, %28 : vector<8x32xf32>
    %32 = arith.addf %30, %31 : vector<8x32xf32>
    %33 = math.tanh %32 : vector<8x32xf32>
    %34 = arith.mulf %29, %33 : vector<8x32xf32>
    %c0_20 = arith.constant 0 : index
    %c0_21 = arith.constant 0 : index
    %35 = vector.load %arg12[%c0_20, %c0_21] : memref<64x32xf32, #tpu.memory_space<vmem>>, vector<8x32xf32>
    tpu.vector_store %arg12[%c0_20, %c0_21], %34 {strides = array<i32>} : memref<64x32xf32, #tpu.memory_space<vmem>>, vector<8x32xf32>,
    %c8 = arith.constant 8 : index
    %c0_22 = arith.constant 0 : index
    %36 = vector.load %arg16[%c8, %c0_22] : memref<64x128xf32, #tpu.memory_space<vmem>>, vector<8x128xf32>
    %37 = arith.truncf %34 : vector<8x32xf32> to vector<8x32xbf16>
    %cst_23 = arith.constant dense<0.000000e+00> : vector<8x128xf32>
    %38 = tpu.matmul %37, %11, %cst_23 {dimension_numbers = #tpu.dot_dimension_numbers<[1], [0], [0], [1], [0, 0, 1, 1], [], []>} : vector<8x32xbf16>, vector<32x128xbf16>, vector<8x128xf32> -> vector<8x128xf32>
    %39 = arith.addf %36, %38 : vector<8x128xf32>
    %40 = arith.negf %39 : vector<8x128xf32>
    %41 = math.exp %40 : vector<8x128xf32>
    %cst_24 = arith.constant 1.000000e+00 : f32
    %42 = vector.broadcast %cst_24 : f32 to vector<8x128xf32>
    %43 = arith.addf %42, %41 : vector<8x128xf32>
    %44 = arith.divf %42, %43 : vector<8x128xf32>
    %45 = math.tanh %39 : vector<8x128xf32>
    %46 = vector.extract_strided_slice %44 {offsets = [0, 0], sizes = [8, 32], strides = [1, 1]} : vector<8x128xf32> to vector<8x32xf32>
    %47 = vector.extract_strided_slice %44 {offsets = [0, 32], sizes = [8, 32], strides = [1, 1]} : vector<8x128xf32> to vector<8x32xf32>
    %48 = vector.extract_strided_slice %45 {offsets = [0, 64], sizes = [8, 32], strides = [1, 1]} : vector<8x128xf32> to vector<8x32xf32>
    %49 = vector.extract_strided_slice %44 {offsets = [0, 96], sizes = [8, 32], strides = [1, 1]} : vector<8x128xf32> to vector<8x32xf32>
    %50 = arith.mulf %47, %32 : vector<8x32xf32>
    %51 = arith.mulf %46, %48 : vector<8x32xf32>
    %52 = arith.addf %50, %51 : vector<8x32xf32>
    %53 = math.tanh %52 : vector<8x32xf32>
    %54 = arith.mulf %49, %53 : vector<8x32xf32>
    %c8_25 = arith.constant 8 : index
    %c0_26 = arith.constant 0 : index
    %55 = vector.load %arg12[%c8_25, %c0_26] : memref<64x32xf32, #tpu.memory_space<vmem>>, vector<8x32xf32>
    tpu.vector_store %arg12[%c8_25, %c0_26], %54 {strides = array<i32>} : memref<64x32xf32, #tpu.memory_space<vmem>>, vector<8x32xf32>,
    %c16 = arith.constant 16 : index
    %c0_27 = arith.constant 0 : index
    %56 = vector.load %arg16[%c16, %c0_27] : memref<64x128xf32, #tpu.memory_space<vmem>>, vector<8x128xf32>
    %57 = arith.truncf %54 : vector<8x32xf32> to vector<8x32xbf16>
    %cst_28 = arith.constant dense<0.000000e+00> : vector<8x128xf32>
    %58 = tpu.matmul %57, %11, %cst_28 {dimension_numbers = #tpu.dot_dimension_numbers<[1], [0], [0], [1], [0, 0, 1, 1], [], []>} : vector<8x32xbf16>, vector<32x128xbf16>, vector<8x128xf32> -> vector<8x128xf32>
    %59 = arith.addf %56, %58 : vector<8x128xf32>
    %60 = arith.negf %59 : vector<8x128xf32>
    %61 = math.exp %60 : vector<8x128xf32>
    %cst_29 = arith.constant 1.000000e+00 : f32
    %62 = vector.broadcast %cst_29 : f32 to vector<8x128xf32>
    %63 = arith.addf %62, %61 : vector<8x128xf32>
    %64 = arith.divf %62, %63 : vector<8x128xf32>
    %65 = math.tanh %59 : vector<8x128xf32>
    %66 = vector.extract_strided_slice %64 {offsets = [0, 0], sizes = [8, 32], strides = [1, 1]} : vector<8x128xf32> to vector<8x32xf32>
    %67 = vector.extract_strided_slice %64 {offsets = [0, 32], sizes = [8, 32], strides = [1, 1]} : vector<8x128xf32> to vector<8x32xf32>
    %68 = vector.extract_strided_slice %65 {offsets = [0, 64], sizes = [8, 32], strides = [1, 1]} : vector<8x128xf32> to vector<8x32xf32>
    %69 = vector.extract_strided_slice %64 {offsets = [0, 96], sizes = [8, 32], strides = [1, 1]} : vector<8x128xf32> to vector<8x32xf32>
    %70 = arith.mulf %67, %52 : vector<8x32xf32>
    %71 = arith.mulf %66, %68 : vector<8x32xf32>
    %72 = arith.addf %70, %71 : vector<8x32xf32>
    %73 = math.tanh %72 : vector<8x32xf32>
    %74 = arith.mulf %69, %73 : vector<8x32xf32>
    %c16_30 = arith.constant 16 : index
    %c0_31 = arith.constant 0 : index
    %75 = vector.load %arg12[%c16_30, %c0_31] : memref<64x32xf32, #tpu.memory_space<vmem>>, vector<8x32xf32>
    tpu.vector_store %arg12[%c16_30, %c0_31], %74 {strides = array<i32>} : memref<64x32xf32, #tpu.memory_space<vmem>>, vector<8x32xf32>,
    %c24 = arith.constant 24 : index
    %c0_32 = arith.constant 0 : index
    %76 = vector.load %arg16[%c24, %c0_32] : memref<64x128xf32, #tpu.memory_space<vmem>>, vector<8x128xf32>
    %77 = arith.truncf %74 : vector<8x32xf32> to vector<8x32xbf16>
    %cst_33 = arith.constant dense<0.000000e+00> : vector<8x128xf32>
    %78 = tpu.matmul %77, %11, %cst_33 {dimension_numbers = #tpu.dot_dimension_numbers<[1], [0], [0], [1], [0, 0, 1, 1], [], []>} : vector<8x32xbf16>, vector<32x128xbf16>, vector<8x128xf32> -> vector<8x128xf32>
    %79 = arith.addf %76, %78 : vector<8x128xf32>
    %80 = arith.negf %79 : vector<8x128xf32>
    %81 = math.exp %80 : vector<8x128xf32>
    %cst_34 = arith.constant 1.000000e+00 : f32
    %82 = vector.broadcast %cst_34 : f32 to vector<8x128xf32>
    %83 = arith.addf %82, %81 : vector<8x128xf32>
    %84 = arith.divf %82, %83 : vector<8x128xf32>
    %85 = math.tanh %79 : vector<8x128xf32>
    %86 = vector.extract_strided_slice %84 {offsets = [0, 0], sizes = [8, 32], strides = [1, 1]} : vector<8x128xf32> to vector<8x32xf32>
    %87 = vector.extract_strided_slice %84 {offsets = [0, 32], sizes = [8, 32], strides = [1, 1]} : vector<8x128xf32> to vector<8x32xf32>
    %88 = vector.extract_strided_slice %85 {offsets = [0, 64], sizes = [8, 32], strides = [1, 1]} : vector<8x128xf32> to vector<8x32xf32>
    %89 = vector.extract_strided_slice %84 {offsets = [0, 96], sizes = [8, 32], strides = [1, 1]} : vector<8x128xf32> to vector<8x32xf32>
    %90 = arith.mulf %87, %72 : vector<8x32xf32>
    %91 = arith.mulf %86, %88 : vector<8x32xf32>
    %92 = arith.addf %90, %91 : vector<8x32xf32>
    %93 = math.tanh %92 : vector<8x32xf32>
    %94 = arith.mulf %89, %93 : vector<8x32xf32>
    %c24_35 = arith.constant 24 : index
    %c0_36 = arith.constant 0 : index
    %95 = vector.load %arg12[%c24_35, %c0_36] : memref<64x32xf32, #tpu.memory_space<vmem>>, vector<8x32xf32>
    tpu.vector_store %arg12[%c24_35, %c0_36], %94 {strides = array<i32>} : memref<64x32xf32, #tpu.memory_space<vmem>>, vector<8x32xf32>,
    %c32 = arith.constant 32 : index
    %c0_37 = arith.constant 0 : index
    %96 = vector.load %arg16[%c32, %c0_37] : memref<64x128xf32, #tpu.memory_space<vmem>>, vector<8x128xf32>
    %97 = arith.truncf %94 : vector<8x32xf32> to vector<8x32xbf16>
    %cst_38 = arith.constant dense<0.000000e+00> : vector<8x128xf32>
    %98 = tpu.matmul %97, %11, %cst_38 {dimension_numbers = #tpu.dot_dimension_numbers<[1], [0], [0], [1], [0, 0, 1, 1], [], []>} : vector<8x32xbf16>, vector<32x128xbf16>, vector<8x128xf32> -> vector<8x128xf32>
    %99 = arith.addf %96, %98 : vector<8x128xf32>
    %100 = arith.negf %99 : vector<8x128xf32>
    %101 = math.exp %100 : vector<8x128xf32>
    %cst_39 = arith.constant 1.000000e+00 : f32
    %102 = vector.broadcast %cst_39 : f32 to vector<8x128xf32>
    %103 = arith.addf %102, %101 : vector<8x128xf32>
    %104 = arith.divf %102, %103 : vector<8x128xf32>
    %105 = math.tanh %99 : vector<8x128xf32>
    %106 = vector.extract_strided_slice %104 {offsets = [0, 0], sizes = [8, 32], strides = [1, 1]} : vector<8x128xf32> to vector<8x32xf32>
    %107 = vector.extract_strided_slice %104 {offsets = [0, 32], sizes = [8, 32], strides = [1, 1]} : vector<8x128xf32> to vector<8x32xf32>
    %108 = vector.extract_strided_slice %105 {offsets = [0, 64], sizes = [8, 32], strides = [1, 1]} : vector<8x128xf32> to vector<8x32xf32>
    %109 = vector.extract_strided_slice %104 {offsets = [0, 96], sizes = [8, 32], strides = [1, 1]} : vector<8x128xf32> to vector<8x32xf32>
    %110 = arith.mulf %107, %92 : vector<8x32xf32>
    %111 = arith.mulf %106, %108 : vector<8x32xf32>
    %112 = arith.addf %110, %111 : vector<8x32xf32>
    %113 = math.tanh %112 : vector<8x32xf32>
    %114 = arith.mulf %109, %113 : vector<8x32xf32>
    %c32_40 = arith.constant 32 : index
    %c0_41 = arith.constant 0 : index
    %115 = vector.load %arg12[%c32_40, %c0_41] : memref<64x32xf32, #tpu.memory_space<vmem>>, vector<8x32xf32>
    tpu.vector_store %arg12[%c32_40, %c0_41], %114 {strides = array<i32>} : memref<64x32xf32, #tpu.memory_space<vmem>>, vector<8x32xf32>,
    %c40 = arith.constant 40 : index
    %c0_42 = arith.constant 0 : index
    %116 = vector.load %arg16[%c40, %c0_42] : memref<64x128xf32, #tpu.memory_space<vmem>>, vector<8x128xf32>
    %117 = arith.truncf %114 : vector<8x32xf32> to vector<8x32xbf16>
    %cst_43 = arith.constant dense<0.000000e+00> : vector<8x128xf32>
    %118 = tpu.matmul %117, %11, %cst_43 {dimension_numbers = #tpu.dot_dimension_numbers<[1], [0], [0], [1], [0, 0, 1, 1], [], []>} : vector<8x32xbf16>, vector<32x128xbf16>, vector<8x128xf32> -> vector<8x128xf32>
    %119 = arith.addf %116, %118 : vector<8x128xf32>
    %120 = arith.negf %119 : vector<8x128xf32>
    %121 = math.exp %120 : vector<8x128xf32>
    %cst_44 = arith.constant 1.000000e+00 : f32
    %122 = vector.broadcast %cst_44 : f32 to vector<8x128xf32>
    %123 = arith.addf %122, %121 : vector<8x128xf32>
    %124 = arith.divf %122, %123 : vector<8x128xf32>
    %125 = math.tanh %119 : vector<8x128xf32>
    %126 = vector.extract_strided_slice %124 {offsets = [0, 0], sizes = [8, 32], strides = [1, 1]} : vector<8x128xf32> to vector<8x32xf32>
    %127 = vector.extract_strided_slice %124 {offsets = [0, 32], sizes = [8, 32], strides = [1, 1]} : vector<8x128xf32> to vector<8x32xf32>
    %128 = vector.extract_strided_slice %125 {offsets = [0, 64], sizes = [8, 32], strides = [1, 1]} : vector<8x128xf32> to vector<8x32xf32>
    %129 = vector.extract_strided_slice %124 {offsets = [0, 96], sizes = [8, 32], strides = [1, 1]} : vector<8x128xf32> to vector<8x32xf32>
    %130 = arith.mulf %127, %112 : vector<8x32xf32>
    %131 = arith.mulf %126, %128 : vector<8x32xf32>
    %132 = arith.addf %130, %131 : vector<8x32xf32>
    %133 = math.tanh %132 : vector<8x32xf32>
    %134 = arith.mulf %129, %133 : vector<8x32xf32>
    %c40_45 = arith.constant 40 : index
    %c0_46 = arith.constant 0 : index
    %135 = vector.load %arg12[%c40_45, %c0_46] : memref<64x32xf32, #tpu.memory_space<vmem>>, vector<8x32xf32>
    tpu.vector_store %arg12[%c40_45, %c0_46], %134 {strides = array<i32>} : memref<64x32xf32, #tpu.memory_space<vmem>>, vector<8x32xf32>,
    %c48 = arith.constant 48 : index
    %c0_47 = arith.constant 0 : index
    %136 = vector.load %arg16[%c48, %c0_47] : memref<64x128xf32, #tpu.memory_space<vmem>>, vector<8x128xf32>
    %137 = arith.truncf %134 : vector<8x32xf32> to vector<8x32xbf16>
    %cst_48 = arith.constant dense<0.000000e+00> : vector<8x128xf32>
    %138 = tpu.matmul %137, %11, %cst_48 {dimension_numbers = #tpu.dot_dimension_numbers<[1], [0], [0], [1], [0, 0, 1, 1], [], []>} : vector<8x32xbf16>, vector<32x128xbf16>, vector<8x128xf32> -> vector<8x128xf32>
    %139 = arith.addf %136, %138 : vector<8x128xf32>
    %140 = arith.negf %139 : vector<8x128xf32>
    %141 = math.exp %140 : vector<8x128xf32>
    %cst_49 = arith.constant 1.000000e+00 : f32
    %142 = vector.broadcast %cst_49 : f32 to vector<8x128xf32>
    %143 = arith.addf %142, %141 : vector<8x128xf32>
    %144 = arith.divf %142, %143 : vector<8x128xf32>
    %145 = math.tanh %139 : vector<8x128xf32>
    %146 = vector.extract_strided_slice %144 {offsets = [0, 0], sizes = [8, 32], strides = [1, 1]} : vector<8x128xf32> to vector<8x32xf32>
    %147 = vector.extract_strided_slice %144 {offsets = [0, 32], sizes = [8, 32], strides = [1, 1]} : vector<8x128xf32> to vector<8x32xf32>
    %148 = vector.extract_strided_slice %145 {offsets = [0, 64], sizes = [8, 32], strides = [1, 1]} : vector<8x128xf32> to vector<8x32xf32>
    %149 = vector.extract_strided_slice %144 {offsets = [0, 96], sizes = [8, 32], strides = [1, 1]} : vector<8x128xf32> to vector<8x32xf32>
    %150 = arith.mulf %147, %132 : vector<8x32xf32>
    %151 = arith.mulf %146, %148 : vector<8x32xf32>
    %152 = arith.addf %150, %151 : vector<8x32xf32>
    %153 = math.tanh %152 : vector<8x32xf32>
    %154 = arith.mulf %149, %153 : vector<8x32xf32>
    %c48_50 = arith.constant 48 : index
    %c0_51 = arith.constant 0 : index
    %155 = vector.load %arg12[%c48_50, %c0_51] : memref<64x32xf32, #tpu.memory_space<vmem>>, vector<8x32xf32>
    tpu.vector_store %arg12[%c48_50, %c0_51], %154 {strides = array<i32>} : memref<64x32xf32, #tpu.memory_space<vmem>>, vector<8x32xf32>,
    %c56 = arith.constant 56 : index
    %c0_52 = arith.constant 0 : index
    %156 = vector.load %arg16[%c56, %c0_52] : memref<64x128xf32, #tpu.memory_space<vmem>>, vector<8x128xf32>
    %157 = arith.truncf %154 : vector<8x32xf32> to vector<8x32xbf16>
    %cst_53 = arith.constant dense<0.000000e+00> : vector<8x128xf32>
    %158 = tpu.matmul %157, %11, %cst_53 {dimension_numbers = #tpu.dot_dimension_numbers<[1], [0], [0], [1], [0, 0, 1, 1], [], []>} : vector<8x32xbf16>, vector<32x128xbf16>, vector<8x128xf32> -> vector<8x128xf32>
    %159 = arith.addf %156, %158 : vector<8x128xf32>
    %160 = arith.negf %159 : vector<8x128xf32>
    %161 = math.exp %160 : vector<8x128xf32>
    %cst_54 = arith.constant 1.000000e+00 : f32
    %162 = vector.broadcast %cst_54 : f32 to vector<8x128xf32>
    %163 = arith.addf %162, %161 : vector<8x128xf32>
    %164 = arith.divf %162, %163 : vector<8x128xf32>
    %165 = math.tanh %159 : vector<8x128xf32>
    %166 = vector.extract_strided_slice %164 {offsets = [0, 0], sizes = [8, 32], strides = [1, 1]} : vector<8x128xf32> to vector<8x32xf32>
    %167 = vector.extract_strided_slice %164 {offsets = [0, 32], sizes = [8, 32], strides = [1, 1]} : vector<8x128xf32> to vector<8x32xf32>
    %168 = vector.extract_strided_slice %165 {offsets = [0, 64], sizes = [8, 32], strides = [1, 1]} : vector<8x128xf32> to vector<8x32xf32>
    %169 = vector.extract_strided_slice %164 {offsets = [0, 96], sizes = [8, 32], strides = [1, 1]} : vector<8x128xf32> to vector<8x32xf32>
    %170 = arith.mulf %167, %152 : vector<8x32xf32>
    %171 = arith.mulf %166, %168 : vector<8x32xf32>
    %172 = arith.addf %170, %171 : vector<8x32xf32>
    %173 = math.tanh %172 : vector<8x32xf32>
    %174 = arith.mulf %169, %173 : vector<8x32xf32>
    %c56_55 = arith.constant 56 : index
    %c0_56 = arith.constant 0 : index
    %175 = vector.load %arg12[%c56_55, %c0_56] : memref<64x32xf32, #tpu.memory_space<vmem>>, vector<8x32xf32>
    tpu.vector_store %arg12[%c56_55, %c0_56], %174 {strides = array<i32>} : memref<64x32xf32, #tpu.memory_space<vmem>>, vector<8x32xf32>,
    %c0_57 = arith.constant 0 : index
    %c0_58 = arith.constant 0 : index
    %c0_59 = arith.constant 0 : index
    %176 = vector.load %arg14[%c0_57, %c0_58, %c0_59] : memref<2x8x32xf32, #tpu.memory_space<vmem>>, vector<1x8x32xf32>
    %177 = vector.shape_cast %176 : vector<1x8x32xf32> to vector<8x32xf32>
    %178 = vector.shape_cast %174 : vector<8x32xf32> to vector<1x8x32xf32>
    tpu.vector_store %arg14[%c0_57, %c0_58, %c0_59], %178 {strides = array<i32>} : memref<2x8x32xf32, #tpu.memory_space<vmem>>, vector<1x8x32xf32>,
    %c0_60 = arith.constant 0 : index
    %c0_61 = arith.constant 0 : index
    %c0_62 = arith.constant 0 : index
    %179 = vector.load %arg15[%c0_60, %c0_61, %c0_62] : memref<2x8x32xf32, #tpu.memory_space<vmem>>, vector<1x8x32xf32>
    %180 = vector.shape_cast %179 : vector<1x8x32xf32> to vector<8x32xf32>
    %181 = vector.shape_cast %172 : vector<8x32xf32> to vector<1x8x32xf32>
    tpu.vector_store %arg15[%c0_60, %c0_61, %c0_62], %181 {strides = array<i32>} : memref<2x8x32xf32, #tpu.memory_space<vmem>>, vector<1x8x32xf32>,
    %c0_63 = arith.constant 0 : index
    %c0_64 = arith.constant 0 : index
    %182 = vector.load %arg12[%c0_63, %c0_64] : memref<64x32xf32, #tpu.memory_space<vmem>>, vector<64x32xf32>
    %183 = arith.truncf %182 : vector<64x32xf32> to vector<64x32xbf16>
    %c0_65 = arith.constant 0 : index
    %c0_66 = arith.constant 0 : index
    %184 = vector.load %arg7[%c0_65, %c0_66] : memref<32x128xf32, #tpu.memory_space<vmem>>, vector<32x128xf32>
    %185 = arith.truncf %184 : vector<32x128xf32> to vector<32x128xbf16>
    %cst_67 = arith.constant dense<0.000000e+00> : vector<64x128xf32>
    %186 = tpu.matmul %183, %185, %cst_67 {dimension_numbers = #tpu.dot_dimension_numbers<[1], [0], [0], [1], [0, 0, 1, 1], [], []>} : vector<64x32xbf16>, vector<32x128xbf16>, vector<64x128xf32> -> vector<64x128xf32>
    %c0_68 = arith.constant 0 : index
    %c0_69 = arith.constant 0 : index
    %187 = vector.load %arg9[%c0_68, %c0_69] : memref<1x128xf32, #tpu.memory_space<vmem>>, vector<1x128xf32>
    %188 = vector.broadcast %187 : vector<1x128xf32> to vector<64x128xf32>
    %189 = arith.addf %186, %188 : vector<64x128xf32>
    %c0_70 = arith.constant 0 : index
    %c0_71 = arith.constant 0 : index
    %190 = vector.load %arg16[%c0_70, %c0_71] : memref<64x128xf32, #tpu.memory_space<vmem>>, vector<64x128xf32>
    tpu.vector_store %arg16[%c0_70, %c0_71], %189 {strides = array<i32>} : memref<64x128xf32, #tpu.memory_space<vmem>>, vector<64x128xf32>,
    %c0_72 = arith.constant 0 : index
    %c0_73 = arith.constant 0 : index
    %191 = vector.load %arg8[%c0_72, %c0_73] : memref<32x128xf32, #tpu.memory_space<vmem>>, vector<32x128xf32>
    %192 = arith.truncf %191 : vector<32x128xf32> to vector<32x128xbf16>
    %c1 = arith.constant 1 : index
    %c0_74 = arith.constant 0 : index
    %c0_75 = arith.constant 0 : index
    %193 = vector.load %arg2[%c1, %c0_74, %c0_75] : memref<2x8x32xf32, #tpu.memory_space<vmem>>, vector<1x8x32xf32>
    %194 = vector.shape_cast %193 : vector<1x8x32xf32> to vector<8x32xf32>
    %c1_76 = arith.constant 1 : index
    %c0_77 = arith.constant 0 : index
    %c0_78 = arith.constant 0 : index
    %195 = vector.load %arg3[%c1_76, %c0_77, %c0_78] : memref<2x8x32xf32, #tpu.memory_space<vmem>>, vector<1x8x32xf32>
    %196 = vector.shape_cast %195 : vector<1x8x32xf32> to vector<8x32xf32>
    %c0_79 = arith.constant 0 : index
    %c0_80 = arith.constant 0 : index
    %197 = vector.load %arg16[%c0_79, %c0_80] : memref<64x128xf32, #tpu.memory_space<vmem>>, vector<8x128xf32>
    %198 = arith.truncf %194 : vector<8x32xf32> to vector<8x32xbf16>
    %cst_81 = arith.constant dense<0.000000e+00> : vector<8x128xf32>
    %199 = tpu.matmul %198, %192, %cst_81 {dimension_numbers = #tpu.dot_dimension_numbers<[1], [0], [0], [1], [0, 0, 1, 1], [], []>} : vector<8x32xbf16>, vector<32x128xbf16>, vector<8x128xf32> -> vector<8x128xf32>
    %200 = arith.addf %197, %199 : vector<8x128xf32>
    %201 = arith.negf %200 : vector<8x128xf32>
    %202 = math.exp %201 : vector<8x128xf32>
    %cst_82 = arith.constant 1.000000e+00 : f32
    %203 = vector.broadcast %cst_82 : f32 to vector<8x128xf32>
    %204 = arith.addf %203, %202 : vector<8x128xf32>
    %205 = arith.divf %203, %204 : vector<8x128xf32>
    %206 = math.tanh %200 : vector<8x128xf32>
    %207 = vector.extract_strided_slice %205 {offsets = [0, 0], sizes = [8, 32], strides = [1, 1]} : vector<8x128xf32> to vector<8x32xf32>
    %208 = vector.extract_strided_slice %205 {offsets = [0, 32], sizes = [8, 32], strides = [1, 1]} : vector<8x128xf32> to vector<8x32xf32>
    %209 = vector.extract_strided_slice %206 {offsets = [0, 64], sizes = [8, 32], strides = [1, 1]} : vector<8x128xf32> to vector<8x32xf32>
    %210 = vector.extract_strided_slice %205 {offsets = [0, 96], sizes = [8, 32], strides = [1, 1]} : vector<8x128xf32> to vector<8x32xf32>
    %211 = arith.mulf %208, %196 : vector<8x32xf32>
    %212 = arith.mulf %207, %209 : vector<8x32xf32>
    %213 = arith.addf %211, %212 : vector<8x32xf32>
    %214 = math.tanh %213 : vector<8x32xf32>
    %215 = arith.mulf %210, %214 : vector<8x32xf32>
    %c0_83 = arith.constant 0 : index
    %c0_84 = arith.constant 0 : index
    %216 = vector.load %arg12[%c0_83, %c0_84] : memref<64x32xf32, #tpu.memory_space<vmem>>, vector<8x32xf32>
    tpu.vector_store %arg12[%c0_83, %c0_84], %215 {strides = array<i32>} : memref<64x32xf32, #tpu.memory_space<vmem>>, vector<8x32xf32>,
    %c8_85 = arith.constant 8 : index
    %c0_86 = arith.constant 0 : index
    %217 = vector.load %arg16[%c8_85, %c0_86] : memref<64x128xf32, #tpu.memory_space<vmem>>, vector<8x128xf32>
    %218 = arith.truncf %215 : vector<8x32xf32> to vector<8x32xbf16>
    %cst_87 = arith.constant dense<0.000000e+00> : vector<8x128xf32>
    %219 = tpu.matmul %218, %192, %cst_87 {dimension_numbers = #tpu.dot_dimension_numbers<[1], [0], [0], [1], [0, 0, 1, 1], [], []>} : vector<8x32xbf16>, vector<32x128xbf16>, vector<8x128xf32> -> vector<8x128xf32>
    %220 = arith.addf %217, %219 : vector<8x128xf32>
    %221 = arith.negf %220 : vector<8x128xf32>
    %222 = math.exp %221 : vector<8x128xf32>
    %cst_88 = arith.constant 1.000000e+00 : f32
    %223 = vector.broadcast %cst_88 : f32 to vector<8x128xf32>
    %224 = arith.addf %223, %222 : vector<8x128xf32>
    %225 = arith.divf %223, %224 : vector<8x128xf32>
    %226 = math.tanh %220 : vector<8x128xf32>
    %227 = vector.extract_strided_slice %225 {offsets = [0, 0], sizes = [8, 32], strides = [1, 1]} : vector<8x128xf32> to vector<8x32xf32>
    %228 = vector.extract_strided_slice %225 {offsets = [0, 32], sizes = [8, 32], strides = [1, 1]} : vector<8x128xf32> to vector<8x32xf32>
    %229 = vector.extract_strided_slice %226 {offsets = [0, 64], sizes = [8, 32], strides = [1, 1]} : vector<8x128xf32> to vector<8x32xf32>
    %230 = vector.extract_strided_slice %225 {offsets = [0, 96], sizes = [8, 32], strides = [1, 1]} : vector<8x128xf32> to vector<8x32xf32>
    %231 = arith.mulf %228, %213 : vector<8x32xf32>
    %232 = arith.mulf %227, %229 : vector<8x32xf32>
    %233 = arith.addf %231, %232 : vector<8x32xf32>
    %234 = math.tanh %233 : vector<8x32xf32>
    %235 = arith.mulf %230, %234 : vector<8x32xf32>
    %c8_89 = arith.constant 8 : index
    %c0_90 = arith.constant 0 : index
    %236 = vector.load %arg12[%c8_89, %c0_90] : memref<64x32xf32, #tpu.memory_space<vmem>>, vector<8x32xf32>
    tpu.vector_store %arg12[%c8_89, %c0_90], %235 {strides = array<i32>} : memref<64x32xf32, #tpu.memory_space<vmem>>, vector<8x32xf32>,
    %c16_91 = arith.constant 16 : index
    %c0_92 = arith.constant 0 : index
    %237 = vector.load %arg16[%c16_91, %c0_92] : memref<64x128xf32, #tpu.memory_space<vmem>>, vector<8x128xf32>
    %238 = arith.truncf %235 : vector<8x32xf32> to vector<8x32xbf16>
    %cst_93 = arith.constant dense<0.000000e+00> : vector<8x128xf32>
    %239 = tpu.matmul %238, %192, %cst_93 {dimension_numbers = #tpu.dot_dimension_numbers<[1], [0], [0], [1], [0, 0, 1, 1], [], []>} : vector<8x32xbf16>, vector<32x128xbf16>, vector<8x128xf32> -> vector<8x128xf32>
    %240 = arith.addf %237, %239 : vector<8x128xf32>
    %241 = arith.negf %240 : vector<8x128xf32>
    %242 = math.exp %241 : vector<8x128xf32>
    %cst_94 = arith.constant 1.000000e+00 : f32
    %243 = vector.broadcast %cst_94 : f32 to vector<8x128xf32>
    %244 = arith.addf %243, %242 : vector<8x128xf32>
    %245 = arith.divf %243, %244 : vector<8x128xf32>
    %246 = math.tanh %240 : vector<8x128xf32>
    %247 = vector.extract_strided_slice %245 {offsets = [0, 0], sizes = [8, 32], strides = [1, 1]} : vector<8x128xf32> to vector<8x32xf32>
    %248 = vector.extract_strided_slice %245 {offsets = [0, 32], sizes = [8, 32], strides = [1, 1]} : vector<8x128xf32> to vector<8x32xf32>
    %249 = vector.extract_strided_slice %246 {offsets = [0, 64], sizes = [8, 32], strides = [1, 1]} : vector<8x128xf32> to vector<8x32xf32>
    %250 = vector.extract_strided_slice %245 {offsets = [0, 96], sizes = [8, 32], strides = [1, 1]} : vector<8x128xf32> to vector<8x32xf32>
    %251 = arith.mulf %248, %233 : vector<8x32xf32>
    %252 = arith.mulf %247, %249 : vector<8x32xf32>
    %253 = arith.addf %251, %252 : vector<8x32xf32>
    %254 = math.tanh %253 : vector<8x32xf32>
    %255 = arith.mulf %250, %254 : vector<8x32xf32>
    %c16_95 = arith.constant 16 : index
    %c0_96 = arith.constant 0 : index
    %256 = vector.load %arg12[%c16_95, %c0_96] : memref<64x32xf32, #tpu.memory_space<vmem>>, vector<8x32xf32>
    tpu.vector_store %arg12[%c16_95, %c0_96], %255 {strides = array<i32>} : memref<64x32xf32, #tpu.memory_space<vmem>>, vector<8x32xf32>,
    %c24_97 = arith.constant 24 : index
    %c0_98 = arith.constant 0 : index
    %257 = vector.load %arg16[%c24_97, %c0_98] : memref<64x128xf32, #tpu.memory_space<vmem>>, vector<8x128xf32>
    %258 = arith.truncf %255 : vector<8x32xf32> to vector<8x32xbf16>
    %cst_99 = arith.constant dense<0.000000e+00> : vector<8x128xf32>
    %259 = tpu.matmul %258, %192, %cst_99 {dimension_numbers = #tpu.dot_dimension_numbers<[1], [0], [0], [1], [0, 0, 1, 1], [], []>} : vector<8x32xbf16>, vector<32x128xbf16>, vector<8x128xf32> -> vector<8x128xf32>
    %260 = arith.addf %257, %259 : vector<8x128xf32>
    %261 = arith.negf %260 : vector<8x128xf32>
    %262 = math.exp %261 : vector<8x128xf32>
    %cst_100 = arith.constant 1.000000e+00 : f32
    %263 = vector.broadcast %cst_100 : f32 to vector<8x128xf32>
    %264 = arith.addf %263, %262 : vector<8x128xf32>
    %265 = arith.divf %263, %264 : vector<8x128xf32>
    %266 = math.tanh %260 : vector<8x128xf32>
    %267 = vector.extract_strided_slice %265 {offsets = [0, 0], sizes = [8, 32], strides = [1, 1]} : vector<8x128xf32> to vector<8x32xf32>
    %268 = vector.extract_strided_slice %265 {offsets = [0, 32], sizes = [8, 32], strides = [1, 1]} : vector<8x128xf32> to vector<8x32xf32>
    %269 = vector.extract_strided_slice %266 {offsets = [0, 64], sizes = [8, 32], strides = [1, 1]} : vector<8x128xf32> to vector<8x32xf32>
    %270 = vector.extract_strided_slice %265 {offsets = [0, 96], sizes = [8, 32], strides = [1, 1]} : vector<8x128xf32> to vector<8x32xf32>
    %271 = arith.mulf %268, %253 : vector<8x32xf32>
    %272 = arith.mulf %267, %269 : vector<8x32xf32>
    %273 = arith.addf %271, %272 : vector<8x32xf32>
    %274 = math.tanh %273 : vector<8x32xf32>
    %275 = arith.mulf %270, %274 : vector<8x32xf32>
    %c24_101 = arith.constant 24 : index
    %c0_102 = arith.constant 0 : index
    %276 = vector.load %arg12[%c24_101, %c0_102] : memref<64x32xf32, #tpu.memory_space<vmem>>, vector<8x32xf32>
    tpu.vector_store %arg12[%c24_101, %c0_102], %275 {strides = array<i32>} : memref<64x32xf32, #tpu.memory_space<vmem>>, vector<8x32xf32>,
    %c32_103 = arith.constant 32 : index
    %c0_104 = arith.constant 0 : index
    %277 = vector.load %arg16[%c32_103, %c0_104] : memref<64x128xf32, #tpu.memory_space<vmem>>, vector<8x128xf32>
    %278 = arith.truncf %275 : vector<8x32xf32> to vector<8x32xbf16>
    %cst_105 = arith.constant dense<0.000000e+00> : vector<8x128xf32>
    %279 = tpu.matmul %278, %192, %cst_105 {dimension_numbers = #tpu.dot_dimension_numbers<[1], [0], [0], [1], [0, 0, 1, 1], [], []>} : vector<8x32xbf16>, vector<32x128xbf16>, vector<8x128xf32> -> vector<8x128xf32>
    %280 = arith.addf %277, %279 : vector<8x128xf32>
    %281 = arith.negf %280 : vector<8x128xf32>
    %282 = math.exp %281 : vector<8x128xf32>
    %cst_106 = arith.constant 1.000000e+00 : f32
    %283 = vector.broadcast %cst_106 : f32 to vector<8x128xf32>
    %284 = arith.addf %283, %282 : vector<8x128xf32>
    %285 = arith.divf %283, %284 : vector<8x128xf32>
    %286 = math.tanh %280 : vector<8x128xf32>
    %287 = vector.extract_strided_slice %285 {offsets = [0, 0], sizes = [8, 32], strides = [1, 1]} : vector<8x128xf32> to vector<8x32xf32>
    %288 = vector.extract_strided_slice %285 {offsets = [0, 32], sizes = [8, 32], strides = [1, 1]} : vector<8x128xf32> to vector<8x32xf32>
    %289 = vector.extract_strided_slice %286 {offsets = [0, 64], sizes = [8, 32], strides = [1, 1]} : vector<8x128xf32> to vector<8x32xf32>
    %290 = vector.extract_strided_slice %285 {offsets = [0, 96], sizes = [8, 32], strides = [1, 1]} : vector<8x128xf32> to vector<8x32xf32>
    %291 = arith.mulf %288, %273 : vector<8x32xf32>
    %292 = arith.mulf %287, %289 : vector<8x32xf32>
    %293 = arith.addf %291, %292 : vector<8x32xf32>
    %294 = math.tanh %293 : vector<8x32xf32>
    %295 = arith.mulf %290, %294 : vector<8x32xf32>
    %c32_107 = arith.constant 32 : index
    %c0_108 = arith.constant 0 : index
    %296 = vector.load %arg12[%c32_107, %c0_108] : memref<64x32xf32, #tpu.memory_space<vmem>>, vector<8x32xf32>
    tpu.vector_store %arg12[%c32_107, %c0_108], %295 {strides = array<i32>} : memref<64x32xf32, #tpu.memory_space<vmem>>, vector<8x32xf32>,
    %c40_109 = arith.constant 40 : index
    %c0_110 = arith.constant 0 : index
    %297 = vector.load %arg16[%c40_109, %c0_110] : memref<64x128xf32, #tpu.memory_space<vmem>>, vector<8x128xf32>
    %298 = arith.truncf %295 : vector<8x32xf32> to vector<8x32xbf16>
    %cst_111 = arith.constant dense<0.000000e+00> : vector<8x128xf32>
    %299 = tpu.matmul %298, %192, %cst_111 {dimension_numbers = #tpu.dot_dimension_numbers<[1], [0], [0], [1], [0, 0, 1, 1], [], []>} : vector<8x32xbf16>, vector<32x128xbf16>, vector<8x128xf32> -> vector<8x128xf32>
    %300 = arith.addf %297, %299 : vector<8x128xf32>
    %301 = arith.negf %300 : vector<8x128xf32>
    %302 = math.exp %301 : vector<8x128xf32>
    %cst_112 = arith.constant 1.000000e+00 : f32
    %303 = vector.broadcast %cst_112 : f32 to vector<8x128xf32>
    %304 = arith.addf %303, %302 : vector<8x128xf32>
    %305 = arith.divf %303, %304 : vector<8x128xf32>
    %306 = math.tanh %300 : vector<8x128xf32>
    %307 = vector.extract_strided_slice %305 {offsets = [0, 0], sizes = [8, 32], strides = [1, 1]} : vector<8x128xf32> to vector<8x32xf32>
    %308 = vector.extract_strided_slice %305 {offsets = [0, 32], sizes = [8, 32], strides = [1, 1]} : vector<8x128xf32> to vector<8x32xf32>
    %309 = vector.extract_strided_slice %306 {offsets = [0, 64], sizes = [8, 32], strides = [1, 1]} : vector<8x128xf32> to vector<8x32xf32>
    %310 = vector.extract_strided_slice %305 {offsets = [0, 96], sizes = [8, 32], strides = [1, 1]} : vector<8x128xf32> to vector<8x32xf32>
    %311 = arith.mulf %308, %293 : vector<8x32xf32>
    %312 = arith.mulf %307, %309 : vector<8x32xf32>
    %313 = arith.addf %311, %312 : vector<8x32xf32>
    %314 = math.tanh %313 : vector<8x32xf32>
    %315 = arith.mulf %310, %314 : vector<8x32xf32>
    %c40_113 = arith.constant 40 : index
    %c0_114 = arith.constant 0 : index
    %316 = vector.load %arg12[%c40_113, %c0_114] : memref<64x32xf32, #tpu.memory_space<vmem>>, vector<8x32xf32>
    tpu.vector_store %arg12[%c40_113, %c0_114], %315 {strides = array<i32>} : memref<64x32xf32, #tpu.memory_space<vmem>>, vector<8x32xf32>,
    %c48_115 = arith.constant 48 : index
    %c0_116 = arith.constant 0 : index
    %317 = vector.load %arg16[%c48_115, %c0_116] : memref<64x128xf32, #tpu.memory_space<vmem>>, vector<8x128xf32>
    %318 = arith.truncf %315 : vector<8x32xf32> to vector<8x32xbf16>
    %cst_117 = arith.constant dense<0.000000e+00> : vector<8x128xf32>
    %319 = tpu.matmul %318, %192, %cst_117 {dimension_numbers = #tpu.dot_dimension_numbers<[1], [0], [0], [1], [0, 0, 1, 1], [], []>} : vector<8x32xbf16>, vector<32x128xbf16>, vector<8x128xf32> -> vector<8x128xf32>
    %320 = arith.addf %317, %319 : vector<8x128xf32>
    %321 = arith.negf %320 : vector<8x128xf32>
    %322 = math.exp %321 : vector<8x128xf32>
    %cst_118 = arith.constant 1.000000e+00 : f32
    %323 = vector.broadcast %cst_118 : f32 to vector<8x128xf32>
    %324 = arith.addf %323, %322 : vector<8x128xf32>
    %325 = arith.divf %323, %324 : vector<8x128xf32>
    %326 = math.tanh %320 : vector<8x128xf32>
    %327 = vector.extract_strided_slice %325 {offsets = [0, 0], sizes = [8, 32], strides = [1, 1]} : vector<8x128xf32> to vector<8x32xf32>
    %328 = vector.extract_strided_slice %325 {offsets = [0, 32], sizes = [8, 32], strides = [1, 1]} : vector<8x128xf32> to vector<8x32xf32>
    %329 = vector.extract_strided_slice %326 {offsets = [0, 64], sizes = [8, 32], strides = [1, 1]} : vector<8x128xf32> to vector<8x32xf32>
    %330 = vector.extract_strided_slice %325 {offsets = [0, 96], sizes = [8, 32], strides = [1, 1]} : vector<8x128xf32> to vector<8x32xf32>
    %331 = arith.mulf %328, %313 : vector<8x32xf32>
    %332 = arith.mulf %327, %329 : vector<8x32xf32>
    %333 = arith.addf %331, %332 : vector<8x32xf32>
    %334 = math.tanh %333 : vector<8x32xf32>
    %335 = arith.mulf %330, %334 : vector<8x32xf32>
    %c48_119 = arith.constant 48 : index
    %c0_120 = arith.constant 0 : index
    %336 = vector.load %arg12[%c48_119, %c0_120] : memref<64x32xf32, #tpu.memory_space<vmem>>, vector<8x32xf32>
    tpu.vector_store %arg12[%c48_119, %c0_120], %335 {strides = array<i32>} : memref<64x32xf32, #tpu.memory_space<vmem>>, vector<8x32xf32>,
    %c56_121 = arith.constant 56 : index
    %c0_122 = arith.constant 0 : index
    %337 = vector.load %arg16[%c56_121, %c0_122] : memref<64x128xf32, #tpu.memory_space<vmem>>, vector<8x128xf32>
    %338 = arith.truncf %335 : vector<8x32xf32> to vector<8x32xbf16>
    %cst_123 = arith.constant dense<0.000000e+00> : vector<8x128xf32>
    %339 = tpu.matmul %338, %192, %cst_123 {dimension_numbers = #tpu.dot_dimension_numbers<[1], [0], [0], [1], [0, 0, 1, 1], [], []>} : vector<8x32xbf16>, vector<32x128xbf16>, vector<8x128xf32> -> vector<8x128xf32>
    %340 = arith.addf %337, %339 : vector<8x128xf32>
    %341 = arith.negf %340 : vector<8x128xf32>
    %342 = math.exp %341 : vector<8x128xf32>
    %cst_124 = arith.constant 1.000000e+00 : f32
    %343 = vector.broadcast %cst_124 : f32 to vector<8x128xf32>
    %344 = arith.addf %343, %342 : vector<8x128xf32>
    %345 = arith.divf %343, %344 : vector<8x128xf32>
    %346 = math.tanh %340 : vector<8x128xf32>
    %347 = vector.extract_strided_slice %345 {offsets = [0, 0], sizes = [8, 32], strides = [1, 1]} : vector<8x128xf32> to vector<8x32xf32>
    %348 = vector.extract_strided_slice %345 {offsets = [0, 32], sizes = [8, 32], strides = [1, 1]} : vector<8x128xf32> to vector<8x32xf32>
    %349 = vector.extract_strided_slice %346 {offsets = [0, 64], sizes = [8, 32], strides = [1, 1]} : vector<8x128xf32> to vector<8x32xf32>
    %350 = vector.extract_strided_slice %345 {offsets = [0, 96], sizes = [8, 32], strides = [1, 1]} : vector<8x128xf32> to vector<8x32xf32>
    %351 = arith.mulf %348, %333 : vector<8x32xf32>
    %352 = arith.mulf %347, %349 : vector<8x32xf32>
    %353 = arith.addf %351, %352 : vector<8x32xf32>
    %354 = math.tanh %353 : vector<8x32xf32>
    %355 = arith.mulf %350, %354 : vector<8x32xf32>
    %c56_125 = arith.constant 56 : index
    %c0_126 = arith.constant 0 : index
    %356 = vector.load %arg12[%c56_125, %c0_126] : memref<64x32xf32, #tpu.memory_space<vmem>>, vector<8x32xf32>
    tpu.vector_store %arg12[%c56_125, %c0_126], %355 {strides = array<i32>} : memref<64x32xf32, #tpu.memory_space<vmem>>, vector<8x32xf32>,
    %c1_127 = arith.constant 1 : index
    %c0_128 = arith.constant 0 : index
    %c0_129 = arith.constant 0 : index
    %357 = vector.load %arg14[%c1_127, %c0_128, %c0_129] : memref<2x8x32xf32, #tpu.memory_space<vmem>>, vector<1x8x32xf32>
    %358 = vector.shape_cast %357 : vector<1x8x32xf32> to vector<8x32xf32>
    %359 = vector.shape_cast %355 : vector<8x32xf32> to vector<1x8x32xf32>
    tpu.vector_store %arg14[%c1_127, %c0_128, %c0_129], %359 {strides = array<i32>} : memref<2x8x32xf32, #tpu.memory_space<vmem>>, vector<1x8x32xf32>,
    %c1_130 = arith.constant 1 : index
    %c0_131 = arith.constant 0 : index
    %c0_132 = arith.constant 0 : index
    %360 = vector.load %arg15[%c1_130, %c0_131, %c0_132] : memref<2x8x32xf32, #tpu.memory_space<vmem>>, vector<1x8x32xf32>
    %361 = vector.shape_cast %360 : vector<1x8x32xf32> to vector<8x32xf32>
    %362 = vector.shape_cast %353 : vector<8x32xf32> to vector<1x8x32xf32>
    tpu.vector_store %arg15[%c1_130, %c0_131, %c0_132], %362 {strides = array<i32>} : memref<2x8x32xf32, #tpu.memory_space<vmem>>, vector<1x8x32xf32>,
    %c0_133 = arith.constant 0 : index
    %c0_134 = arith.constant 0 : index
    %363 = vector.load %arg12[%c0_133, %c0_134] : memref<64x32xf32, #tpu.memory_space<vmem>>, vector<64x32xf32>
    %c0_135 = arith.constant 0 : index
    %c0_136 = arith.constant 0 : index
    %364 = vector.load %arg10[%c0_135, %c0_136] : memref<32x1xf32, #tpu.memory_space<vmem>>, vector<32x1xf32>
    %cst_137 = arith.constant dense<0.000000e+00> : vector<64x1xf32>
    %365 = tpu.matmul %363, %364, %cst_137 {dimension_numbers = #tpu.dot_dimension_numbers<[1], [0], [0], [1], [0, 0, 1, 1], [], []>} : vector<64x32xf32>, vector<32x1xf32>, vector<64x1xf32> -> vector<64x1xf32>
    %c0_138 = arith.constant 0 : index
    %c0_139 = arith.constant 0 : index
    %366 = vector.load %arg11[%c0_138, %c0_139] : memref<1x1xf32, #tpu.memory_space<vmem>>, vector<1x1xf32>
    %367 = vector.broadcast %366 : vector<1x1xf32> to vector<64x1xf32>
    %368 = arith.addf %365, %367 : vector<64x1xf32>
    %c0_140 = arith.constant 0 : index
    %c0_141 = arith.constant 0 : index
    %369 = vector.load %arg13[%c0_140, %c0_141] : memref<64x1xf32, #tpu.memory_space<vmem>>, vector<64x1xf32>
    tpu.vector_store %arg13[%c0_140, %c0_141], %368 {strides = array<i32>} : memref<64x1xf32, #tpu.memory_space<vmem>>, vector<64x1xf32>,
    return
  }
  func.func @transform_0(%arg0: i32) -> (i32, i32, i32) {
    %c0_i32 = arith.constant 0 : i32
    %c0_i32_0 = arith.constant 0 : i32
    %c0_i32_1 = arith.constant 0 : i32
    %c0_i32_2 = arith.constant 0 : i32
    return %c0_i32, %c0_i32_0, %c0_i32_1 : i32, i32, i32
  }
  func.func @transform_1(%arg0: i32) -> (i32, i32, i32) {
    %c0_i32 = arith.constant 0 : i32
    %c0_i32_0 = arith.constant 0 : i32
    %c0_i32_1 = arith.constant 0 : i32
    %c0_i32_2 = arith.constant 0 : i32
    return %c0_i32, %c0_i32_0, %c0_i32_1 : i32, i32, i32
  }
  func.func @transform_2(%arg0: i32) -> (i32, i32, i32) {
    %c0_i32 = arith.constant 0 : i32
    %c0_i32_0 = arith.constant 0 : i32
    %c0_i32_1 = arith.constant 0 : i32
    %c0_i32_2 = arith.constant 0 : i32
    return %c0_i32, %c0_i32_0, %c0_i32_1 : i32, i32, i32
  }
  func.func @transform_3(%arg0: i32) -> (i32, i32) {
    %c0_i32 = arith.constant 0 : i32
    %c0_i32_0 = arith.constant 0 : i32
    %c0_i32_1 = arith.constant 0 : i32
    return %c0_i32, %c0_i32_0 : i32, i32
  }
  func.func @transform_4(%arg0: i32) -> (i32, i32) {
    %c0_i32 = arith.constant 0 : i32
    %c0_i32_0 = arith.constant 0 : i32
    %c0_i32_1 = arith.constant 0 : i32
    return %c0_i32, %c0_i32_0 : i32, i32
  }
  func.func @transform_5(%arg0: i32) -> (i32, i32) {
    %c0_i32 = arith.constant 0 : i32
    %c0_i32_0 = arith.constant 0 : i32
    %c0_i32_1 = arith.constant 0 : i32
    return %c0_i32, %c0_i32_0 : i32, i32
  }
  func.func @transform_6(%arg0: i32) -> (i32, i32) {
    %c0_i32 = arith.constant 0 : i32
    %c0_i32_0 = arith.constant 0 : i32
    %c0_i32_1 = arith.constant 0 : i32
    return %c0_i32, %c0_i32_0 : i32, i32
  }
  func.func @transform_7(%arg0: i32) -> (i32, i32) {
    %c0_i32 = arith.constant 0 : i32
    %c0_i32_0 = arith.constant 0 : i32
    %c0_i32_1 = arith.constant 0 : i32
    return %c0_i32, %c0_i32_0 : i32, i32
  }
  func.func @transform_8(%arg0: i32) -> (i32, i32) {
    %c0_i32 = arith.constant 0 : i32
    %c0_i32_0 = arith.constant 0 : i32
    %c0_i32_1 = arith.constant 0 : i32
    return %c0_i32, %c0_i32_0 : i32, i32
  }
  func.func @transform_9(%arg0: i32) -> (i32, i32) {
    %c0_i32 = arith.constant 0 : i32
    %c0_i32_0 = arith.constant 0 : i32
    %c0_i32_1 = arith.constant 0 : i32
    return %c0_i32, %c0_i32_0 : i32, i32
  }
  func.func @transform_10(%arg0: i32) -> (i32, i32) {
    %c0_i32 = arith.constant 0 : i32
    %c0_i32_0 = arith.constant 0 : i32
    %c0_i32_1 = arith.constant 0 : i32
    return %c0_i32, %c0_i32_0 : i32, i32
  }
  func.func @transform_11(%arg0: i32) -> (i32, i32) {
    %c0_i32 = arith.constant 0 : i32
    %c0_i32_0 = arith.constant 0 : i32
    %c0_i32_1 = arith.constant 0 : i32
    return %c0_i32, %c0_i32_0 : i32, i32
  }
  func.func @transform_12(%arg0: i32) -> (i32, i32) {
    %c0_i32 = arith.constant 0 : i32
    %c0_i32_0 = arith.constant 0 : i32
    %c0_i32_1 = arith.constant 0 : i32
    return %c0_i32, %c0_i32_0 : i32, i32
  }
  func.func @transform_13(%arg0: i32) -> (i32, i32, i32) {
    %c0_i32 = arith.constant 0 : i32
    %c0_i32_0 = arith.constant 0 : i32
    %c0_i32_1 = arith.constant 0 : i32
    %c0_i32_2 = arith.constant 0 : i32
    return %c0_i32, %c0_i32_0, %c0_i32_1 : i32, i32, i32
  }
  func.func @transform_14(%arg0: i32) -> (i32, i32, i32) {
    %c0_i32 = arith.constant 0 : i32
    %c0_i32_0 = arith.constant 0 : i32
    %c0_i32_1 = arith.constant 0 : i32
    %c0_i32_2 = arith.constant 0 : i32
    return %c0_i32, %c0_i32_0, %c0_i32_1 : i32, i32, i32
  }
}

</mosaic_0001>

<llo_original>
// kernel: tpu_custom_call.1
$region0: #{tpu_custom_call.1}
  #allocation0 [shape = 'u32[]', space=smem, size = 0x4, offset = 0x4, fixed_abs, tag = 'smem constant byte address 0x4 - core index']
  #allocation1 [shape = 'u32[144,128]{1,0:T(1,128)}', space=vmem, size = 0x12000, scoped, tag = 'internal scratch']
  #allocation2 [shape = 'f32[64,128]{1,0:T(8,128)}', space=vmem, size = 0x8000, scoped, tag = 'scratch operand']
  #allocation3 [shape = 'f32[1,1]{1,0:T(1,128)S(1)}', space=vmem, size = 0x200, scoped, tag = 'scoped memory for tpu_custom_call.1']
  %s0 = inlined_call_operand.hbm [shape: f32[8,8,32], index: 0, kind: input, shape index: {}]
  %s1 = inlined_call_operand.hbm [shape: f32[2,8,32], index: 1, kind: input, shape index: {}]
  %s2 = inlined_call_operand.hbm [shape: f32[2,8,32], index: 2, kind: input, shape index: {}]
  %s3 = inlined_call_operand.vmem [shape: f32[32,128], index: 3, kind: input, shape index: {}]
  %s4 = inlined_call_operand.hbm [shape: f32[32,128], index: 4, kind: input, shape index: {}]
  %s5 = inlined_call_operand.vmem [shape: f32[1,128], index: 5, kind: input, shape index: {}]
  %s6 = inlined_call_operand.hbm [shape: f32[32,128], index: 6, kind: input, shape index: {}]
  %s7 = inlined_call_operand.hbm [shape: f32[32,128], index: 7, kind: input, shape index: {}]
  %s8 = inlined_call_operand.vmem [shape: f32[1,128], index: 8, kind: input, shape index: {}]
  %s9 = inlined_call_operand.vmem [shape: f32[32,1], index: 9, kind: input, shape index: {}]
  %s10 = inlined_call_operand.<no memory space> [shape: f32[1,1], index: 10, kind: input, shape index: {}]
  %s11 = inlined_call_operand.vmem [shape: f32[64,32], index: 11, kind: output, shape index: {0}]
  %s12 = inlined_call_operand.vmem [shape: f32[64,1], index: 12, kind: output, shape index: {1}]
  %s13 = inlined_call_operand.hbm [shape: f32[2,8,32], index: 13, kind: output, shape index: {2}]
  %s14 = inlined_call_operand.hbm [shape: f32[2,8,32], index: 14, kind: output, shape index: {3}]
  %15 = xla_tuple %s11, %s12, %s13, %s14
  %s16 = sld [smem:[#allocation0]]
  $region102: #{tpu_custom_call.1} parent=0
    _
  %s18 = ssub.s32 1, %s16
  %s19 = scalar_select 0, %s18, %s16
  %v20 = vstv %s10
  %21 = vst [vmem:[#allocation3] sm:$0x1] %v20
  $region1: #{tpu_custom_call.1} parent=0
    #allocation4 [shape = 'u8[32768]{0}', space=vmem, size = 0x8000, scoped, tag = 'input window, operand 0, single buffered']
    #allocation5 [shape = 's32[1]{0}', space=sflag, size = 0x4, scoped, tag = 'scoped memory for tpu_custom_call.1']
    #allocation6 [shape = 's32[1]{0}', space=sflag, size = 0x4, scoped, tag = 'scoped memory for tpu_custom_call.1']
    #allocation7 [shape = 'u8[8192]{0}', space=vmem, size = 0x2000, scoped, tag = 'input window, operand 1, single buffered']
    #allocation8 [shape = 's32[1]{0}', space=sflag, size = 0x4, scoped, tag = 'scoped memory for tpu_custom_call.1']
    #allocation9 [shape = 'u8[8192]{0}', space=vmem, size = 0x2000, scoped, tag = 'input window, operand 2, single buffered']
    #allocation10 [shape = 'u8[16384]{0}', space=vmem, size = 0x4000, scoped, tag = 'input window, operand 4, single buffered']
    #allocation11 [shape = 's32[1]{0}', space=sflag, size = 0x4, scoped, tag = 'scoped memory for tpu_custom_call.1']
    #allocation12 [shape = 'u8[16384]{0}', space=vmem, size = 0x4000, scoped, tag = 'input window, operand 6, single buffered']
    #allocation13 [shape = 'u8[16384]{0}', space=vmem, size = 0x4000, scoped, tag = 'input window, operand 7, single buffered']
    #allocation14 [shape = 's32[1]{0}', space=sflag, size = 0x4, scoped, tag = 'scoped memory for tpu_custom_call.1']
    #allocation15 [shape = 'u8[8192]{0}', space=vmem, size = 0x2000, scoped, tag = 'output window, operand 2, single buffered']
    #allocation16 [shape = 'u8[8192]{0}', space=vmem, size = 0x2000, scoped, tag = 'output window, operand 3, single buffered']
    #allocation17 [shape = 's32[1]{0}', space=sflag, size = 0x4, scoped, tag = 'scoped memory for tpu_custom_call.1']
    %22 = vsyncpa [#allocation5], 0
    %23 = vsyncpa [#allocation8], 0
    %24 = vsyncpa [#allocation11], 0
    %25 = vsyncpa [#allocation14], 0
    %26 = vsyncpa [#allocation6], 0
    %27 = vsyncpa [#allocation17], 0
    // Predicated region
    $region2: #{tpu_custom_call.1} parent=1 // pred_check
      _
    $region3: #{tpu_custom_call.1} parent=1 // pred_check_branch
      %29 = sbr.rel (0) target = $region5
    $region4: #{tpu_custom_call.1} parent=1 // pred_region
      %s31 = ssub.s32 1024, 1024
      %32 = vsyncadd [#allocation5], %s31
      %s33 = sshll.u32 [#allocation4], 4
      %s34 = int_to_ptr.vmem [resolvable:$true] %s33
      %39 = dma.hbm_to_vmem [thread:$0]  %s0, 1024, %s34, [#allocation5], 128, 128, 8
    $region5: #{tpu_custom_call.1} parent=1 // pred_fallthru
      _
    // Predicated region
    $region6: #{tpu_custom_call.1} parent=1 // pred_check
      _
    $region7: #{tpu_custom_call.1} parent=1 // pred_check_branch
      %41 = sbr.rel (0) target = $region9
    $region8: #{tpu_custom_call.1} parent=1 // pred_region
      %s43 = ssub.s32 256, 256
      %44 = vsyncadd [#allocation8], %s43
      %s45 = sshll.u32 [#allocation7], 4
      %s46 = int_to_ptr.vmem [resolvable:$true] %s45
      %51 = dma.hbm_to_vmem [thread:$0]  %s1, 256, %s46, [#allocation8], 128, 128, 8
    $region9: #{tpu_custom_call.1} parent=1 // pred_fallthru
      _
    // Predicated region
    $region10: #{tpu_custom_call.1} parent=1 // pred_check
      _
    $region11: #{tpu_custom_call.1} parent=1 // pred_check_branch
      %53 = sbr.rel (0) target = $region13
    $region12: #{tpu_custom_call.1} parent=1 // pred_region
      %s55 = ssub.s32 256, 256
      %56 = vsyncadd [#allocation8], %s55
      %s57 = sshll.u32 [#allocation9], 4
      %s58 = int_to_ptr.vmem [resolvable:$true] %s57
      %63 = dma.hbm_to_vmem [thread:$0]  %s2, 256, %s58, [#allocation8], 128, 128, 8
    $region13: #{tpu_custom_call.1} parent=1 // pred_fallthru
      _
    // Predicated region
    $region14: #{tpu_custom_call.1} parent=1 // pred_check
      _
    $region15: #{tpu_custom_call.1} parent=1 // pred_check_branch
      %65 = sbr.rel (0) target = $region17
    $region16: #{tpu_custom_call.1} parent=1 // pred_region
      _
    $region17: #{tpu_custom_call.1} parent=1 // pred_fallthru
      _
    // Predicated region
    $region18: #{tpu_custom_call.1} parent=1 // pred_check
      _
    $region19: #{tpu_custom_call.1} parent=1 // pred_check_branch
      %67 = sbr.rel (0) target = $region21
    $region20: #{tpu_custom_call.1} parent=1 // pred_region
      %s69 = ssub.s32 512, 512
      %70 = vsyncadd [#allocation11], %s69
      %s71 = sshll.u32 [#allocation10], 4
      %s72 = int_to_ptr.vmem [resolvable:$true] %s71
      %77 = dma.hbm_to_vmem [thread:$0]  %s4, 512, %s72, [#allocation11], 128, 128, 8
    $region21: #{tpu_custom_call.1} parent=1 // pred_fallthru
      _
    // Predicated region
    $region22: #{tpu_custom_call.1} parent=1 // pred_check
      _
    $region23: #{tpu_custom_call.1} parent=1 // pred_check_branch
      %79 = sbr.rel (0) target = $region25
    $region24: #{tpu_custom_call.1} parent=1 // pred_region
      _
    $region25: #{tpu_custom_call.1} parent=1 // pred_fallthru
      _
    // Predicated region
    $region26: #{tpu_custom_call.1} parent=1 // pred_check
      _
    $region27: #{tpu_custom_call.1} parent=1 // pred_check_branch
      %81 = sbr.rel (0) target = $region29
    $region28: #{tpu_custom_call.1} parent=1 // pred_region
      %s83 = ssub.s32 512, 512
      %84 = vsyncadd [#allocation11], %s83
      %s85 = sshll.u32 [#allocation12], 4
      %s86 = int_to_ptr.vmem [resolvable:$true] %s85
      %91 = dma.hbm_to_vmem [thread:$0]  %s6, 512, %s86, [#allocation11], 128, 128, 8
    $region29: #{tpu_custom_call.1} parent=1 // pred_fallthru
      _
    // Predicated region
    $region30: #{tpu_custom_call.1} parent=1 // pred_check
      _
    $region31: #{tpu_custom_call.1} parent=1 // pred_check_branch
      %93 = sbr.rel (0) target = $region33
    $region32: #{tpu_custom_call.1} parent=1 // pred_region
      %s95 = ssub.s32 512, 512
      %96 = vsyncadd [#allocation14], %s95
      %s97 = sshll.u32 [#allocation13], 4
      %s98 = int_to_ptr.vmem [resolvable:$true] %s97
      %103 = dma.hbm_to_vmem [thread:$0]  %s7, 512, %s98, [#allocation14], 128, 128, 8
    $region33: #{tpu_custom_call.1} parent=1 // pred_fallthru
      _
    // Predicated region
    $region34: #{tpu_custom_call.1} parent=1 // pred_check
      _
    $region35: #{tpu_custom_call.1} parent=1 // pred_check_branch
      %105 = sbr.rel (0) target = $region37
    $region36: #{tpu_custom_call.1} parent=1 // pred_region
      _
    $region37: #{tpu_custom_call.1} parent=1 // pred_fallthru
      _
    // Predicated region
    $region38: #{tpu_custom_call.1} parent=1 // pred_check
      _
    $region39: #{tpu_custom_call.1} parent=1 // pred_check_branch
      %107 = sbr.rel (0) target = $region41
    $region40: #{tpu_custom_call.1} parent=1 // pred_region
      _
    $region41: #{tpu_custom_call.1} parent=1 // pred_fallthru
      _
    // Predicated region
    $region42: #{tpu_custom_call.1} parent=1 // pred_check
      _
    $region43: #{tpu_custom_call.1} parent=1 // pred_check_branch
      %109 = sbr.rel (0) target = $region45
    $region44: #{tpu_custom_call.1} parent=1 // pred_region
      _
    $region45: #{tpu_custom_call.1} parent=1 // pred_fallthru
      _
    // Predicated region
    $region46: #{tpu_custom_call.1} parent=1 // pred_check
      _
    $region47: #{tpu_custom_call.1} parent=1 // pred_check_branch
      %111 = sbr.rel (0) target = $region49
    $region48: #{tpu_custom_call.1} parent=1 // pred_region
      %112 = dma.done [#allocation5], 1024
    $region49: #{tpu_custom_call.1} parent=1 // pred_fallthru
      _
    // Predicated region
    $region50: #{tpu_custom_call.1} parent=1 // pred_check
      _
    $region51: #{tpu_custom_call.1} parent=1 // pred_check_branch
      %114 = sbr.rel (0) target = $region53
    $region52: #{tpu_custom_call.1} parent=1 // pred_region
      %115 = dma.done [#allocation8], 256
    $region53: #{tpu_custom_call.1} parent=1 // pred_fallthru
      _
    // Predicated region
    $region54: #{tpu_custom_call.1} parent=1 // pred_check
      _
    $region55: #{tpu_custom_call.1} parent=1 // pred_check_branch
      %117 = sbr.rel (0) target = $region57
    $region56: #{tpu_custom_call.1} parent=1 // pred_region
      %118 = dma.done [#allocation8], 256
    $region57: #{tpu_custom_call.1} parent=1 // pred_fallthru
      _
    // Predicated region
    $region58: #{tpu_custom_call.1} parent=1 // pred_check
      _
    $region59: #{tpu_custom_call.1} parent=1 // pred_check_branch
      %120 = sbr.rel (0) target = $region61
    $region60: #{tpu_custom_call.1} parent=1 // pred_region
      %121 = dma.done [#allocation11], 512
    $region61: #{tpu_custom_call.1} parent=1 // pred_fallthru
      _
    // Predicated region
    $region62: #{tpu_custom_call.1} parent=1 // pred_check
      _
    $region63: #{tpu_custom_call.1} parent=1 // pred_check_branch
      %123 = sbr.rel (0) target = $region65
    $region64: #{tpu_custom_call.1} parent=1 // pred_region
      %124 = dma.done [#allocation11], 512
    $region65: #{tpu_custom_call.1} parent=1 // pred_fallthru
      _
    // Predicated region
    $region66: #{tpu_custom_call.1} parent=1 // pred_check
      _
    $region67: #{tpu_custom_call.1} parent=1 // pred_check_branch
      %126 = sbr.rel (0) target = $region69
    $region68: #{tpu_custom_call.1} parent=1 // pred_region
      %127 = dma.done [#allocation14], 512
    $region69: #{tpu_custom_call.1} parent=1 // pred_fallthru
      _
    %v129 = vld [vmem:[#allocation4] sm:$0xff]
    %v130 = vld [vmem:[#allocation4 + $0x8] sm:$0xff]
    %v131 = vld [vmem:[#allocation4 + $0x10] sm:$0xff]
    %v132 = vld [vmem:[#allocation4 + $0x18] sm:$0xff]
    %v133 = vld [vmem:[#allocation4 + $0x20] sm:$0xff]
    %v134 = vld [vmem:[#allocation4 + $0x28] sm:$0xff]
    %v135 = vld [vmem:[#allocation4 + $0x30] sm:$0xff]
    %v136 = vld [vmem:[#allocation4 + $0x38] sm:$0xff]
    %v137 = vpack.c.bf16 %v130, %v129
    %v138 = vpack.c.bf16 %v132, %v131
    %v139 = vpack.c.bf16 %v134, %v133
    %v140 = vpack.c.bf16 %v136, %v135
    %v141 = vld [vmem:[%s3] sm:$0xff]
    %v142 = vld [vmem:[%s3 + $0x8] sm:$0xff]
    %v143 = vld [vmem:[%s3 + $0x10] sm:$0xff]
    %v144 = vld [vmem:[%s3 + $0x18] sm:$0xff]
    %v145 = vpack.c.bf16 %v142, %v141
    %v146 = vpack.c.bf16 %v144, %v143
    %v147 = vld [vmem:[%s5] sm:$0x1]
    %v149 = vlaneseq
    %v150 = vshrl.u32 %v149, 7
    %v151 = vsub.s32 0, %v150
    %v152 = vrot.slane %v147, %v151
    %vm154 = vcmask 261120
    %v156 = vsel %vm154, %v137, 0
    %v159 = vsel %vm154, %v138, 0
    %v162 = vsel %vm154, %v139, 0
    %v165 = vsel %vm154, %v140, 0
    %167 = vmatprep.subr.bf16.mxu0 0
    %168 = vmatpush1.bf16.msra.mxu0 0
    %169 = vmatprep.subr.bf16.mxu0 0
    %170 = vmatpush1.bf16.msra.mxu0 0
    %171 = vmatprep.subr.bf16.mxu0 0
    %172 = vmatpush1.bf16.msra.mxu0 0
    %173 = vmatprep.subr.bf16.mxu0 0
    %174 = vmatpush1.bf16.msra.mxu0 0
    %175 = vmatprep.subr.bf16.mxu0 0
    %176 = vmatpush1.bf16.msra.mxu0 0
    %177 = vmatprep.subr.bf16.mxu0 0
    %178 = vmatpush1.bf16.msra.mxu0 0
    %179 = vmatprep.subr.bf16.mxu0 0
    %180 = vmatpush1.bf16.msra.mxu0 %v146
    %181 = vmatprep.subr.bf16.mxu0 0
    %182 = vmatpush1.bf16.msra.mxu0 %v145
    %183 = vmatprep.subr.bf16.mxu0 0
    %184 = vmatpush2.bf16.msra.mxu0 0
    %185 = vmatprep.subr.bf16.mxu0 0
    %186 = vmatpush2.bf16.msra.mxu0 0
    %187 = vmatprep.subr.bf16.mxu0 0
    %188 = vmatpush2.bf16.msra.mxu0 0
    %189 = vmatprep.subr.bf16.mxu0 0
    %190 = vmatpush2.bf16.msra.mxu0 0
    %191 = vmatprep.subr.bf16.mxu0 0
    %192 = vmatpush2.bf16.msra.mxu0 0
    %193 = vmatprep.subr.bf16.mxu0 0
    %194 = vmatpush2.bf16.msra.mxu0 0
    %195 = vmatprep.subr.bf16.mxu0 0
    %196 = vmatpush2.bf16.msra.mxu0 0
    %197 = vmatprep.subr.bf16.mxu0 0
    %198 = vmatpush2.bf16.msra.mxu0 0
    %199 = vmatprep.mubr.bf16.mxu0 0
    %200 = vmatmul.mubr.bf16.gmra.mxu0 %v156
    %v201 = vpop.f32.mrf.mxu0
    %v202 = vadd.f32 %v152, %v201
    %v203 = vpop.f32.mrf.mxu0
    %v204 = vpop.f32.mrf.mxu0
    %v205 = vadd.f32 %v152, %v204
    %v206 = vpop.f32.mrf.mxu0
    %207 = vmatprep.mubr.bf16.mxu0 0
    %208 = vmatmul.mubr.bf16.gmra.mxu0 %v159
    %v209 = vpop.f32.mrf.mxu0
    %v210 = vadd.f32 %v152, %v209
    %v211 = vpop.f32.mrf.mxu0
    %v212 = vpop.f32.mrf.mxu0
    %v213 = vadd.f32 %v152, %v212
    %v214 = vpop.f32.mrf.mxu0
    %215 = vmatprep.mubr.bf16.mxu0 0
    %216 = vmatmul.mubr.bf16.gmra.mxu0 %v162
    %v217 = vpop.f32.mrf.mxu0
    %v218 = vadd.f32 %v152, %v217
    %v219 = vpop.f32.mrf.mxu0
    %v220 = vpop.f32.mrf.mxu0
    %v221 = vadd.f32 %v152, %v220
    %v222 = vpop.f32.mrf.mxu0
    %223 = vmatprep.mubr.bf16.mxu0 0
    %224 = vmatmul.mubr.bf16.gmra.mxu0 %v165
    %v225 = vpop.f32.mrf.mxu0
    %v226 = vadd.f32 %v152, %v225
    %v227 = vpop.f32.mrf.mxu0
    %v228 = vpop.f32.mrf.mxu0
    %v229 = vadd.f32 %v152, %v228
    %v230 = vpop.f32.mrf.mxu0
    %231 = vdwg.mxu0
    %232 = vst [vmem:[#allocation2] sm:$0xff] %v202
    %233 = vst [vmem:[#allocation2 + $0x8] sm:$0xff] %v205
    %234 = vst [vmem:[#allocation2 + $0x10] sm:$0xff] %v210
    %235 = vst [vmem:[#allocation2 + $0x18] sm:$0xff] %v213
    %236 = vst [vmem:[#allocation2 + $0x20] sm:$0xff] %v218
    %237 = vst [vmem:[#allocation2 + $0x28] sm:$0xff] %v221
    %238 = vst [vmem:[#allocation2 + $0x30] sm:$0xff] %v226
    %239 = vst [vmem:[#allocation2 + $0x38] sm:$0xff] %v229
    %v240 = vld [vmem:[#allocation10] sm:$0xff]
    %v241 = vld [vmem:[#allocation10 + $0x8] sm:$0xff]
    %v242 = vld [vmem:[#allocation10 + $0x10] sm:$0xff]
    %v243 = vld [vmem:[#allocation10 + $0x18] sm:$0xff]
    %v244 = vpack.c.bf16 %v241, %v240
    %v245 = vpack.c.bf16 %v243, %v242
    %v246 = vld [vmem:[#allocation7] sm:$0xff]
    %v247 = vld [vmem:[#allocation9] sm:$0xff]
    %v248 = vld [vmem:[#allocation2] sm:$0xff]
    %v249 = vpack.c.bf16 %v246, %v246
    %v251 = vsel %vm154, %v249, 0
    %253 = vmatprep.subr.bf16.mxu0 0
    %254 = vmatpush1.bf16.msra.mxu0 0
    %255 = vmatprep.subr.bf16.mxu0 0
    %256 = vmatpush1.bf16.msra.mxu0 0
    %257 = vmatprep.subr.bf16.mxu0 0
    %258 = vmatpush1.bf16.msra.mxu0 0
    %259 = vmatprep.subr.bf16.mxu0 0
    %260 = vmatpush1.bf16.msra.mxu0 0
    %261 = vmatprep.subr.bf16.mxu0 0
    %262 = vmatpush1.bf16.msra.mxu0 0
    %263 = vmatprep.subr.bf16.mxu0 0
    %264 = vmatpush1.bf16.msra.mxu0 0
    %265 = vmatprep.subr.bf16.mxu0 0
    %266 = vmatpush1.bf16.msra.mxu0 %v245
    %267 = vmatprep.subr.bf16.mxu0 0
    %268 = vmatpush1.bf16.msra.mxu0 %v244
    %269 = vmatprep.subr.bf16.mxu0 0
    %270 = vmatpush2.bf16.msra.mxu0 0
    %271 = vmatprep.subr.bf16.mxu0 0
    %272 = vmatpush2.bf16.msra.mxu0 0
    %273 = vmatprep.subr.bf16.mxu0 0
    %274 = vmatpush2.bf16.msra.mxu0 0
    %275 = vmatprep.subr.bf16.mxu0 0
    %276 = vmatpush2.bf16.msra.mxu0 0
    %277 = vmatprep.subr.bf16.mxu0 0
    %278 = vmatpush2.bf16.msra.mxu0 0
    %279 = vmatprep.subr.bf16.mxu0 0
    %280 = vmatpush2.bf16.msra.mxu0 0
    %281 = vmatprep.subr.bf16.mxu0 0
    %282 = vmatpush2.bf16.msra.mxu0 0
    %283 = vmatprep.subr.bf16.mxu0 0
    %284 = vmatpush2.bf16.msra.mxu0 0
    %285 = vmatprep.mubr.bf16.mxu0 0
    %286 = vmatmul.mubr.bf16.gmra.mxu0 %v251
    %v287 = vpop.f32.mrf.mxu0
    %v288 = vadd.f32 0.0, %v287
    %v289 = vpop.f32.mrf.mxu0
    %v290 = vpop.f32.mrf.mxu0
    %v291 = vpop.f32.mrf.mxu0
    %292 = vdwg.mxu0
    %v293 = vadd.f32 %v248, %v288
    %v294 = vxor.u32 %v293, 2147483648
    %v295 = vmul.f32 %v294, 1.442695
    %v296 = vpow.pop %v295
    %v297 = vadd.f32 %v296, 1.0
    %v298 = vrcp.pop %v297
    %v299 = vmul.f32 1.0, %v298
    %v300 = vtanh.pop %v293
    %302 = vrot.lane.b32.xlu0 %v247, 32
    %v303 = vpop.permute.xlu0 %302
    %v305 = vmul.f32 %v299, %v303
    %307 = vrot.lane.b32.xlu0 %v300, 64
    %v308 = vpop.permute.xlu0 %307
    %v310 = vmul.f32 %v299, %v308
    %312 = vrot.lane.b32.xlu0 %v310, 32
    %v313 = vpop.permute.xlu0 %312
    %v315 = vadd.f32 %v305, %v313
    %v316 = vtanh.pop %v315
    %318 = vrot.lane.b32.xlu0 %v316, 64
    %v319 = vpop.permute.xlu0 %318
    %v321 = vmul.f32 %v299, %v319
    %323 = vrot.lane.b32.xlu0 %v321, 32
    %v324 = vpop.permute.xlu0 %323
    %326 = vst.msk [vmem:[%s11] sm:$0xff] %vm154, %v324
    %v327 = vld [vmem:[#allocation2 + $0x8] sm:$0xff]
    %v328 = vpack.c.bf16 %v321, %v321
    %330 = vrot.lane.b32.xlu0 %v328, 32
    %v331 = vpop.permute.xlu0 %330
    %v333 = vsel %vm154, %v331, 0
    %335 = vmatprep.subr.bf16.mxu0 0
    %336 = vmatpush1.bf16.msra.mxu0 0
    %337 = vmatprep.subr.bf16.mxu0 0
    %338 = vmatpush1.bf16.msra.mxu0 0
    %339 = vmatprep.subr.bf16.mxu0 0
    %340 = vmatpush1.bf16.msra.mxu0 0
    %341 = vmatprep.subr.bf16.mxu0 0
    %342 = vmatpush1.bf16.msra.mxu0 0
    %343 = vmatprep.subr.bf16.mxu0 0
    %344 = vmatpush1.bf16.msra.mxu0 0
    %345 = vmatprep.subr.bf16.mxu0 0
    %346 = vmatpush1.bf16.msra.mxu0 0
    %347 = vmatprep.subr.bf16.mxu0 0
    %348 = vmatpush1.bf16.msra.mxu0 %v245
    %349 = vmatprep.subr.bf16.mxu0 0
    %350 = vmatpush1.bf16.msra.mxu0 %v244
    %351 = vmatprep.subr.bf16.mxu0 0
    %352 = vmatpush2.bf16.msra.mxu0 0
    %353 = vmatprep.subr.bf16.mxu0 0
    %354 = vmatpush2.bf16.msra.mxu0 0
    %355 = vmatprep.subr.bf16.mxu0 0
    %356 = vmatpush2.bf16.msra.mxu0 0
    %357 = vmatprep.subr.bf16.mxu0 0
    %358 = vmatpush2.bf16.msra.mxu0 0
    %359 = vmatprep.subr.bf16.mxu0 0
    %360 = vmatpush2.bf16.msra.mxu0 0
    %361 = vmatprep.subr.bf16.mxu0 0
    %362 = vmatpush2.bf16.msra.mxu0 0
    %363 = vmatprep.subr.bf16.mxu0 0
    %364 = vmatpush2.bf16.msra.mxu0 0
    %365 = vmatprep.subr.bf16.mxu0 0
    %366 = vmatpush2.bf16.msra.mxu0 0
    %367 = vmatprep.mubr.bf16.mxu0 0
    %368 = vmatmul.mubr.bf16.gmra.mxu0 %v333
    %v369 = vpop.f32.mrf.mxu0
    %v370 = vadd.f32 0.0, %v369
    %v371 = vpop.f32.mrf.mxu0
    %v372 = vpop.f32.mrf.mxu0
    %v373 = vpop.f32.mrf.mxu0
    %374 = vdwg.mxu0
    %v375 = vadd.f32 %v327, %v370
    %v376 = vxor.u32 %v375, 2147483648
    %v377 = vmul.f32 %v376, 1.442695
    %v378 = vpow.pop %v377
    %v379 = vadd.f32 %v378, 1.0
    %v380 = vrcp.pop %v379
    %v381 = vmul.f32 1.0, %v380
    %v382 = vtanh.pop %v375
    %v383 = vmul.f32 %v381, %v315
    %385 = vrot.lane.b32.xlu0 %v382, 64
    %v386 = vpop.permute.xlu0 %385
    %v388 = vmul.f32 %v381, %v386
    %390 = vrot.lane.b32.xlu0 %v388, 32
    %v391 = vpop.permute.xlu0 %390
    %v393 = vadd.f32 %v383, %v391
    %v394 = vtanh.pop %v393
    %396 = vrot.lane.b32.xlu0 %v394, 64
    %v397 = vpop.permute.xlu0 %396
    %v399 = vmul.f32 %v381, %v397
    %401 = vrot.lane.b32.xlu0 %v399, 32
    %v402 = vpop.permute.xlu0 %401
    %404 = vst.msk [vmem:[%s11 + $0x8] sm:$0xff] %vm154, %v402
    %v405 = vld [vmem:[#allocation2 + $0x10] sm:$0xff]
    %v406 = vpack.c.bf16 %v399, %v399
    %408 = vrot.lane.b32.xlu0 %v406, 32
    %v409 = vpop.permute.xlu0 %408
    %v411 = vsel %vm154, %v409, 0
    %413 = vmatprep.subr.bf16.mxu0 0
    %414 = vmatpush1.bf16.msra.mxu0 0
    %415 = vmatprep.subr.bf16.mxu0 0
    %416 = vmatpush1.bf16.msra.mxu0 0
    %417 = vmatprep.subr.bf16.mxu0 0
    %418 = vmatpush1.bf16.msra.mxu0 0
    %419 = vmatprep.subr.bf16.mxu0 0
    %420 = vmatpush1.bf16.msra.mxu0 0
    %421 = vmatprep.subr.bf16.mxu0 0
    %422 = vmatpush1.bf16.msra.mxu0 0
    %423 = vmatprep.subr.bf16.mxu0 0
    %424 = vmatpush1.bf16.msra.mxu0 0
    %425 = vmatprep.subr.bf16.mxu0 0
    %426 = vmatpush1.bf16.msra.mxu0 %v245
    %427 = vmatprep.subr.bf16.mxu0 0
    %428 = vmatpush1.bf16.msra.mxu0 %v244
    %429 = vmatprep.subr.bf16.mxu0 0
    %430 = vmatpush2.bf16.msra.mxu0 0
    %431 = vmatprep.subr.bf16.mxu0 0
    %432 = vmatpush2.bf16.msra.mxu0 0
    %433 = vmatprep.subr.bf16.mxu0 0
    %434 = vmatpush2.bf16.msra.mxu0 0
    %435 = vmatprep.subr.bf16.mxu0 0
    %436 = vmatpush2.bf16.msra.mxu0 0
    %437 = vmatprep.subr.bf16.mxu0 0
    %438 = vmatpush2.bf16.msra.mxu0 0
    %439 = vmatprep.subr.bf16.mxu0 0
    %440 = vmatpush2.bf16.msra.mxu0 0
    %441 = vmatprep.subr.bf16.mxu0 0
    %442 = vmatpush2.bf16.msra.mxu0 0
    %443 = vmatprep.subr.bf16.mxu0 0
    %444 = vmatpush2.bf16.msra.mxu0 0
    %445 = vmatprep.mubr.bf16.mxu0 0
    %446 = vmatmul.mubr.bf16.gmra.mxu0 %v411
    %v447 = vpop.f32.mrf.mxu0
    %v448 = vadd.f32 0.0, %v447
    %v449 = vpop.f32.mrf.mxu0
    %v450 = vpop.f32.mrf.mxu0
    %v451 = vpop.f32.mrf.mxu0
    %452 = vdwg.mxu0
    %v453 = vadd.f32 %v405, %v448
    %v454 = vxor.u32 %v453, 2147483648
    %v455 = vmul.f32 %v454, 1.442695
    %v456 = vpow.pop %v455
    %v457 = vadd.f32 %v456, 1.0
    %v458 = vrcp.pop %v457
    %v459 = vmul.f32 1.0, %v458
    %v460 = vtanh.pop %v453
    %v461 = vmul.f32 %v459, %v393
    %463 = vrot.lane.b32.xlu0 %v460, 64
    %v464 = vpop.permute.xlu0 %463
    %v466 = vmul.f32 %v459, %v464
    %468 = vrot.lane.b32.xlu0 %v466, 32
    %v469 = vpop.permute.xlu0 %468
    %v471 = vadd.f32 %v461, %v469
    %v472 = vtanh.pop %v471
    %474 = vrot.lane.b32.xlu0 %v472, 64
    %v475 = vpop.permute.xlu0 %474
    %v477 = vmul.f32 %v459, %v475
    %479 = vrot.lane.b32.xlu0 %v477, 32
    %v480 = vpop.permute.xlu0 %479
    %482 = vst.msk [vmem:[%s11 + $0x10] sm:$0xff] %vm154, %v480
    %v483 = vld [vmem:[#allocation2 + $0x18] sm:$0xff]
    %v484 = vpack.c.bf16 %v477, %v477
    %486 = vrot.lane.b32.xlu0 %v484, 32
    %v487 = vpop.permute.xlu0 %486
    %v489 = vsel %vm154, %v487, 0
    %491 = vmatprep.subr.bf16.mxu0 0
    %492 = vmatpush1.bf16.msra.mxu0 0
    %493 = vmatprep.subr.bf16.mxu0 0
    %494 = vmatpush1.bf16.msra.mxu0 0
    %495 = vmatprep.subr.bf16.mxu0 0
    %496 = vmatpush1.bf16.msra.mxu0 0
    %497 = vmatprep.subr.bf16.mxu0 0
    %498 = vmatpush1.bf16.msra.mxu0 0
    %499 = vmatprep.subr.bf16.mxu0 0
    %500 = vmatpush1.bf16.msra.mxu0 0
    %501 = vmatprep.subr.bf16.mxu0 0
    %502 = vmatpush1.bf16.msra.mxu0 0
    %503 = vmatprep.subr.bf16.mxu0 0
    %504 = vmatpush1.bf16.msra.mxu0 %v245
    %505 = vmatprep.subr.bf16.mxu0 0
    %506 = vmatpush1.bf16.msra.mxu0 %v244
    %507 = vmatprep.subr.bf16.mxu0 0
    %508 = vmatpush2.bf16.msra.mxu0 0
    %509 = vmatprep.subr.bf16.mxu0 0
    %510 = vmatpush2.bf16.msra.mxu0 0
    %511 = vmatprep.subr.bf16.mxu0 0
    %512 = vmatpush2.bf16.msra.mxu0 0
    %513 = vmatprep.subr.bf16.mxu0 0
    %514 = vmatpush2.bf16.msra.mxu0 0
    %515 = vmatprep.subr.bf16.mxu0 0
    %516 = vmatpush2.bf16.msra.mxu0 0
    %517 = vmatprep.subr.bf16.mxu0 0
    %518 = vmatpush2.bf16.msra.mxu0 0
    %519 = vmatprep.subr.bf16.mxu0 0
    %520 = vmatpush2.bf16.msra.mxu0 0
    %521 = vmatprep.subr.bf16.mxu0 0
    %522 = vmatpush2.bf16.msra.mxu0 0
    %523 = vmatprep.mubr.bf16.mxu0 0
    %524 = vmatmul.mubr.bf16.gmra.mxu0 %v489
    %v525 = vpop.f32.mrf.mxu0
    %v526 = vadd.f32 0.0, %v525
    %v527 = vpop.f32.mrf.mxu0
    %v528 = vpop.f32.mrf.mxu0
    %v529 = vpop.f32.mrf.mxu0
    %530 = vdwg.mxu0
    %v531 = vadd.f32 %v483, %v526
    %v532 = vxor.u32 %v531, 2147483648
    %v533 = vmul.f32 %v532, 1.442695
    %v534 = vpow.pop %v533
    %v535 = vadd.f32 %v534, 1.0
    %v536 = vrcp.pop %v535
    %v537 = vmul.f32 1.0, %v536
    %v538 = vtanh.pop %v531
    %v539 = vmul.f32 %v537, %v471
    %541 = vrot.lane.b32.xlu0 %v538, 64
    %v542 = vpop.permute.xlu0 %541
    %v544 = vmul.f32 %v537, %v542
    %546 = vrot.lane.b32.xlu0 %v544, 32
    %v547 = vpop.permute.xlu0 %546
    %v549 = vadd.f32 %v539, %v547
    %v550 = vtanh.pop %v549
    %552 = vrot.lane.b32.xlu0 %v550, 64
    %v553 = vpop.permute.xlu0 %552
    %v555 = vmul.f32 %v537, %v553
    %557 = vrot.lane.b32.xlu0 %v555, 32
    %v558 = vpop.permute.xlu0 %557
    %560 = vst.msk [vmem:[%s11 + $0x18] sm:$0xff] %vm154, %v558
    %v561 = vld [vmem:[#allocation2 + $0x20] sm:$0xff]
    %v562 = vpack.c.bf16 %v555, %v555
    %564 = vrot.lane.b32.xlu0 %v562, 32
    %v565 = vpop.permute.xlu0 %564
    %v567 = vsel %vm154, %v565, 0
    %569 = vmatprep.subr.bf16.mxu0 0
    %570 = vmatpush1.bf16.msra.mxu0 0
    %571 = vmatprep.subr.bf16.mxu0 0
    %572 = vmatpush1.bf16.msra.mxu0 0
    %573 = vmatprep.subr.bf16.mxu0 0
    %574 = vmatpush1.bf16.msra.mxu0 0
    %575 = vmatprep.subr.bf16.mxu0 0
    %576 = vmatpush1.bf16.msra.mxu0 0
    %577 = vmatprep.subr.bf16.mxu0 0
    %578 = vmatpush1.bf16.msra.mxu0 0
    %579 = vmatprep.subr.bf16.mxu0 0
    %580 = vmatpush1.bf16.msra.mxu0 0
    %581 = vmatprep.subr.bf16.mxu0 0
    %582 = vmatpush1.bf16.msra.mxu0 %v245
    %583 = vmatprep.subr.bf16.mxu0 0
    %584 = vmatpush1.bf16.msra.mxu0 %v244
    %585 = vmatprep.subr.bf16.mxu0 0
    %586 = vmatpush2.bf16.msra.mxu0 0
    %587 = vmatprep.subr.bf16.mxu0 0
    %588 = vmatpush2.bf16.msra.mxu0 0
    %589 = vmatprep.subr.bf16.mxu0 0
    %590 = vmatpush2.bf16.msra.mxu0 0
    %591 = vmatprep.subr.bf16.mxu0 0
    %592 = vmatpush2.bf16.msra.mxu0 0
    %593 = vmatprep.subr.bf16.mxu0 0
    %594 = vmatpush2.bf16.msra.mxu0 0
    %595 = vmatprep.subr.bf16.mxu0 0
    %596 = vmatpush2.bf16.msra.mxu0 0
    %597 = vmatprep.subr.bf16.mxu0 0
    %598 = vmatpush2.bf16.msra.mxu0 0
    %599 = vmatprep.subr.bf16.mxu0 0
    %600 = vmatpush2.bf16.msra.mxu0 0
    %601 = vmatprep.mubr.bf16.mxu0 0
    %602 = vmatmul.mubr.bf16.gmra.mxu0 %v567
    %v603 = vpop.f32.mrf.mxu0
    %v604 = vadd.f32 0.0, %v603
    %v605 = vpop.f32.mrf.mxu0
    %v606 = vpop.f32.mrf.mxu0
    %v607 = vpop.f32.mrf.mxu0
    %608 = vdwg.mxu0
    %v609 = vadd.f32 %v561, %v604
    %v610 = vxor.u32 %v609, 2147483648
    %v611 = vmul.f32 %v610, 1.442695
    %v612 = vpow.pop %v611
    %v613 = vadd.f32 %v612, 1.0
    %v614 = vrcp.pop %v613
    %v615 = vmul.f32 1.0, %v614
    %v616 = vtanh.pop %v609
    %v617 = vmul.f32 %v615, %v549
    %619 = vrot.lane.b32.xlu0 %v616, 64
    %v620 = vpop.permute.xlu0 %619
    %v622 = vmul.f32 %v615, %v620
    %624 = vrot.lane.b32.xlu0 %v622, 32
    %v625 = vpop.permute.xlu0 %624
    %v627 = vadd.f32 %v617, %v625
    %v628 = vtanh.pop %v627
    %630 = vrot.lane.b32.xlu0 %v628, 64
    %v631 = vpop.permute.xlu0 %630
    %v633 = vmul.f32 %v615, %v631
    %635 = vrot.lane.b32.xlu0 %v633, 32
    %v636 = vpop.permute.xlu0 %635
    %638 = vst.msk [vmem:[%s11 + $0x20] sm:$0xff] %vm154, %v636
    %v639 = vld [vmem:[#allocation2 + $0x28] sm:$0xff]
    %v640 = vpack.c.bf16 %v633, %v633
    %642 = vrot.lane.b32.xlu0 %v640, 32
    %v643 = vpop.permute.xlu0 %642
    %v645 = vsel %vm154, %v643, 0
    %647 = vmatprep.subr.bf16.mxu0 0
    %648 = vmatpush1.bf16.msra.mxu0 0
    %649 = vmatprep.subr.bf16.mxu0 0
    %650 = vmatpush1.bf16.msra.mxu0 0
    %651 = vmatprep.subr.bf16.mxu0 0
    %652 = vmatpush1.bf16.msra.mxu0 0
    %653 = vmatprep.subr.bf16.mxu0 0
    %654 = vmatpush1.bf16.msra.mxu0 0
    %655 = vmatprep.subr.bf16.mxu0 0
    %656 = vmatpush1.bf16.msra.mxu0 0
    %657 = vmatprep.subr.bf16.mxu0 0
    %658 = vmatpush1.bf16.msra.mxu0 0
    %659 = vmatprep.subr.bf16.mxu0 0
    %660 = vmatpush1.bf16.msra.mxu0 %v245
    %661 = vmatprep.subr.bf16.mxu0 0
    %662 = vmatpush1.bf16.msra.mxu0 %v244
    %663 = vmatprep.subr.bf16.mxu0 0
    %664 = vmatpush2.bf16.msra.mxu0 0
    %665 = vmatprep.subr.bf16.mxu0 0
    %666 = vmatpush2.bf16.msra.mxu0 0
    %667 = vmatprep.subr.bf16.mxu0 0
    %668 = vmatpush2.bf16.msra.mxu0 0
    %669 = vmatprep.subr.bf16.mxu0 0
    %670 = vmatpush2.bf16.msra.mxu0 0
    %671 = vmatprep.subr.bf16.mxu0 0
    %672 = vmatpush2.bf16.msra.mxu0 0
    %673 = vmatprep.subr.bf16.mxu0 0
    %674 = vmatpush2.bf16.msra.mxu0 0
    %675 = vmatprep.subr.bf16.mxu0 0
    %676 = vmatpush2.bf16.msra.mxu0 0
    %677 = vmatprep.subr.bf16.mxu0 0
    %678 = vmatpush2.bf16.msra.mxu0 0
    %679 = vmatprep.mubr.bf16.mxu0 0
    %680 = vmatmul.mubr.bf16.gmra.mxu0 %v645
    %v681 = vpop.f32.mrf.mxu0
    %v682 = vadd.f32 0.0, %v681
    %v683 = vpop.f32.mrf.mxu0
    %v684 = vpop.f32.mrf.mxu0
    %v685 = vpop.f32.mrf.mxu0
    %686 = vdwg.mxu0
    %v687 = vadd.f32 %v639, %v682
    %v688 = vxor.u32 %v687, 2147483648
    %v689 = vmul.f32 %v688, 1.442695
    %v690 = vpow.pop %v689
    %v691 = vadd.f32 %v690, 1.0
    %v692 = vrcp.pop %v691
    %v693 = vmul.f32 1.0, %v692
    %v694 = vtanh.pop %v687
    %v695 = vmul.f32 %v693, %v627
    %697 = vrot.lane.b32.xlu0 %v694, 64
    %v698 = vpop.permute.xlu0 %697
    %v700 = vmul.f32 %v693, %v698
    %702 = vrot.lane.b32.xlu0 %v700, 32
    %v703 = vpop.permute.xlu0 %702
    %v705 = vadd.f32 %v695, %v703
    %v706 = vtanh.pop %v705
    %708 = vrot.lane.b32.xlu0 %v706, 64
    %v709 = vpop.permute.xlu0 %708
    %v711 = vmul.f32 %v693, %v709
    %713 = vrot.lane.b32.xlu0 %v711, 32
    %v714 = vpop.permute.xlu0 %713
    %716 = vst.msk [vmem:[%s11 + $0x28] sm:$0xff] %vm154, %v714
    %v717 = vld [vmem:[#allocation2 + $0x30] sm:$0xff]
    %v718 = vpack.c.bf16 %v711, %v711
    %720 = vrot.lane.b32.xlu0 %v718, 32
    %v721 = vpop.permute.xlu0 %720
    %v723 = vsel %vm154, %v721, 0
    %725 = vmatprep.subr.bf16.mxu0 0
    %726 = vmatpush1.bf16.msra.mxu0 0
    %727 = vmatprep.subr.bf16.mxu0 0
    %728 = vmatpush1.bf16.msra.mxu0 0
    %729 = vmatprep.subr.bf16.mxu0 0
    %730 = vmatpush1.bf16.msra.mxu0 0
    %731 = vmatprep.subr.bf16.mxu0 0
    %732 = vmatpush1.bf16.msra.mxu0 0
    %733 = vmatprep.subr.bf16.mxu0 0
    %734 = vmatpush1.bf16.msra.mxu0 0
    %735 = vmatprep.subr.bf16.mxu0 0
    %736 = vmatpush1.bf16.msra.mxu0 0
    %737 = vmatprep.subr.bf16.mxu0 0
    %738 = vmatpush1.bf16.msra.mxu0 %v245
    %739 = vmatprep.subr.bf16.mxu0 0
    %740 = vmatpush1.bf16.msra.mxu0 %v244
    %741 = vmatprep.subr.bf16.mxu0 0
    %742 = vmatpush2.bf16.msra.mxu0 0
    %743 = vmatprep.subr.bf16.mxu0 0
    %744 = vmatpush2.bf16.msra.mxu0 0
    %745 = vmatprep.subr.bf16.mxu0 0
    %746 = vmatpush2.bf16.msra.mxu0 0
    %747 = vmatprep.subr.bf16.mxu0 0
    %748 = vmatpush2.bf16.msra.mxu0 0
    %749 = vmatprep.subr.bf16.mxu0 0
    %750 = vmatpush2.bf16.msra.mxu0 0
    %751 = vmatprep.subr.bf16.mxu0 0
    %752 = vmatpush2.bf16.msra.mxu0 0
    %753 = vmatprep.subr.bf16.mxu0 0
    %754 = vmatpush2.bf16.msra.mxu0 0
    %755 = vmatprep.subr.bf16.mxu0 0
    %756 = vmatpush2.bf16.msra.mxu0 0
    %757 = vmatprep.mubr.bf16.mxu0 0
    %758 = vmatmul.mubr.bf16.gmra.mxu0 %v723
    %v759 = vpop.f32.mrf.mxu0
    %v760 = vadd.f32 0.0, %v759
    %v761 = vpop.f32.mrf.mxu0
    %v762 = vpop.f32.mrf.mxu0
    %v763 = vpop.f32.mrf.mxu0
    %764 = vdwg.mxu0
    %v765 = vadd.f32 %v717, %v760
    %v766 = vxor.u32 %v765, 2147483648
    %v767 = vmul.f32 %v766, 1.442695
    %v768 = vpow.pop %v767
    %v769 = vadd.f32 %v768, 1.0
    %v770 = vrcp.pop %v769
    %v771 = vmul.f32 1.0, %v770
    %v772 = vtanh.pop %v765
    %v773 = vmul.f32 %v771, %v705
    %775 = vrot.lane.b32.xlu0 %v772, 64
    %v776 = vpop.permute.xlu0 %775
    %v778 = vmul.f32 %v771, %v776
    %780 = vrot.lane.b32.xlu0 %v778, 32
    %v781 = vpop.permute.xlu0 %780
    %v783 = vadd.f32 %v773, %v781
    %v784 = vtanh.pop %v783
    %786 = vrot.lane.b32.xlu0 %v784, 64
    %v787 = vpop.permute.xlu0 %786
    %v789 = vmul.f32 %v771, %v787
    %791 = vrot.lane.b32.xlu0 %v789, 32
    %v792 = vpop.permute.xlu0 %791
    %794 = vst.msk [vmem:[%s11 + $0x30] sm:$0xff] %vm154, %v792
    %v795 = vld [vmem:[#allocation2 + $0x38] sm:$0xff]
    %v796 = vpack.c.bf16 %v789, %v789
    %798 = vrot.lane.b32.xlu0 %v796, 32
    %v799 = vpop.permute.xlu0 %798
    %v801 = vsel %vm154, %v799, 0
    %803 = vmatprep.subr.bf16.mxu0 0
    %804 = vmatpush1.bf16.msra.mxu0 0
    %805 = vmatprep.subr.bf16.mxu0 0
    %806 = vmatpush1.bf16.msra.mxu0 0
    %807 = vmatprep.subr.bf16.mxu0 0
    %808 = vmatpush1.bf16.msra.mxu0 0
    %809 = vmatprep.subr.bf16.mxu0 0
    %810 = vmatpush1.bf16.msra.mxu0 0
    %811 = vmatprep.subr.bf16.mxu0 0
    %812 = vmatpush1.bf16.msra.mxu0 0
    %813 = vmatprep.subr.bf16.mxu0 0
    %814 = vmatpush1.bf16.msra.mxu0 0
    %815 = vmatprep.subr.bf16.mxu0 0
    %816 = vmatpush1.bf16.msra.mxu0 %v245
    %817 = vmatprep.subr.bf16.mxu0 0
    %818 = vmatpush1.bf16.msra.mxu0 %v244
    %819 = vmatprep.subr.bf16.mxu0 0
    %820 = vmatpush2.bf16.msra.mxu0 0
    %821 = vmatprep.subr.bf16.mxu0 0
    %822 = vmatpush2.bf16.msra.mxu0 0
    %823 = vmatprep.subr.bf16.mxu0 0
    %824 = vmatpush2.bf16.msra.mxu0 0
    %825 = vmatprep.subr.bf16.mxu0 0
    %826 = vmatpush2.bf16.msra.mxu0 0
    %827 = vmatprep.subr.bf16.mxu0 0
    %828 = vmatpush2.bf16.msra.mxu0 0
    %829 = vmatprep.subr.bf16.mxu0 0
    %830 = vmatpush2.bf16.msra.mxu0 0
    %831 = vmatprep.subr.bf16.mxu0 0
    %832 = vmatpush2.bf16.msra.mxu0 0
    %833 = vmatprep.subr.bf16.mxu0 0
    %834 = vmatpush2.bf16.msra.mxu0 0
    %835 = vmatprep.mubr.bf16.mxu0 0
    %836 = vmatmul.mubr.bf16.gmra.mxu0 %v801
    %v837 = vpop.f32.mrf.mxu0
    %v838 = vadd.f32 0.0, %v837
    %v839 = vpop.f32.mrf.mxu0
    %v840 = vpop.f32.mrf.mxu0
    %v841 = vpop.f32.mrf.mxu0
    %842 = vdwg.mxu0
    %v843 = vadd.f32 %v795, %v838
    %v844 = vxor.u32 %v843, 2147483648
    %v845 = vmul.f32 %v844, 1.442695
    %v846 = vpow.pop %v845
    %v847 = vadd.f32 %v846, 1.0
    %v848 = vrcp.pop %v847
    %v849 = vmul.f32 1.0, %v848
    %v850 = vtanh.pop %v843
    %v851 = vmul.f32 %v849, %v783
    %853 = vrot.lane.b32.xlu0 %v850, 64
    %v854 = vpop.permute.xlu0 %853
    %v856 = vmul.f32 %v849, %v854
    %858 = vrot.lane.b32.xlu0 %v856, 32
    %v859 = vpop.permute.xlu0 %858
    %v861 = vadd.f32 %v851, %v859
    %v862 = vtanh.pop %v861
    %864 = vrot.lane.b32.xlu0 %v862, 64
    %v865 = vpop.permute.xlu0 %864
    %v867 = vmul.f32 %v849, %v865
    %869 = vrot.lane.b32.xlu0 %v867, 32
    %v870 = vpop.permute.xlu0 %869
    %872 = vst.msk [vmem:[%s11 + $0x38] sm:$0xff] %vm154, %v870
    %873 = vst.msk [vmem:[#allocation15] sm:$0xff] %vm154, %v870
    %875 = vrot.lane.b32.xlu0 %v861, 96
    %v876 = vpop.permute.xlu0 %875
    %878 = vst.msk [vmem:[#allocation16] sm:$0xff] %vm154, %v876
    %v879 = vld [vmem:[%s11] sm:$0xff]
    %v880 = vld [vmem:[%s11 + $0x8] sm:$0xff]
    %v881 = vld [vmem:[%s11 + $0x10] sm:$0xff]
    %v882 = vld [vmem:[%s11 + $0x18] sm:$0xff]
    %v883 = vld [vmem:[%s11 + $0x20] sm:$0xff]
    %v884 = vld [vmem:[%s11 + $0x28] sm:$0xff]
    %v885 = vld [vmem:[%s11 + $0x30] sm:$0xff]
    %v886 = vld [vmem:[%s11 + $0x38] sm:$0xff]
    %v887 = vpack.c.bf16 %v880, %v879
    %v888 = vpack.c.bf16 %v882, %v881
    %v889 = vpack.c.bf16 %v884, %v883
    %v890 = vpack.c.bf16 %v886, %v885
    %v891 = vld [vmem:[#allocation12] sm:$0xff]
    %v892 = vld [vmem:[#allocation12 + $0x8] sm:$0xff]
    %v893 = vld [vmem:[#allocation12 + $0x10] sm:$0xff]
    %v894 = vld [vmem:[#allocation12 + $0x18] sm:$0xff]
    %v895 = vpack.c.bf16 %v892, %v891
    %v896 = vpack.c.bf16 %v894, %v893
    %v897 = vld [vmem:[%s8] sm:$0x1]
    %v899 = vlaneseq
    %v900 = vshrl.u32 %v899, 7
    %v901 = vsub.s32 0, %v900
    %v902 = vrot.slane %v897, %v901
    %v905 = vsel %vm154, %v887, 0
    %v908 = vsel %vm154, %v888, 0
    %v911 = vsel %vm154, %v889, 0
    %v914 = vsel %vm154, %v890, 0
    %916 = vmatprep.subr.bf16.mxu0 0
    %917 = vmatpush1.bf16.msra.mxu0 0
    %918 = vmatprep.subr.bf16.mxu0 0
    %919 = vmatpush1.bf16.msra.mxu0 0
    %920 = vmatprep.subr.bf16.mxu0 0
    %921 = vmatpush1.bf16.msra.mxu0 0
    %922 = vmatprep.subr.bf16.mxu0 0
    %923 = vmatpush1.bf16.msra.mxu0 0
    %924 = vmatprep.subr.bf16.mxu0 0
    %925 = vmatpush1.bf16.msra.mxu0 0
    %926 = vmatprep.subr.bf16.mxu0 0
    %927 = vmatpush1.bf16.msra.mxu0 0
    %928 = vmatprep.subr.bf16.mxu0 0
    %929 = vmatpush1.bf16.msra.mxu0 %v896
    %930 = vmatprep.subr.bf16.mxu0 0
    %931 = vmatpush1.bf16.msra.mxu0 %v895
    %932 = vmatprep.subr.bf16.mxu0 0
    %933 = vmatpush2.bf16.msra.mxu0 0
    %934 = vmatprep.subr.bf16.mxu0 0
    %935 = vmatpush2.bf16.msra.mxu0 0
    %936 = vmatprep.subr.bf16.mxu0 0
    %937 = vmatpush2.bf16.msra.mxu0 0
    %938 = vmatprep.subr.bf16.mxu0 0
    %939 = vmatpush2.bf16.msra.mxu0 0
    %940 = vmatprep.subr.bf16.mxu0 0
    %941 = vmatpush2.bf16.msra.mxu0 0
    %942 = vmatprep.subr.bf16.mxu0 0
    %943 = vmatpush2.bf16.msra.mxu0 0
    %944 = vmatprep.subr.bf16.mxu0 0
    %945 = vmatpush2.bf16.msra.mxu0 0
    %946 = vmatprep.subr.bf16.mxu0 0
    %947 = vmatpush2.bf16.msra.mxu0 0
    %948 = vmatprep.mubr.bf16.mxu0 0
    %949 = vmatmul.mubr.bf16.gmra.mxu0 %v905
    %v950 = vpop.f32.mrf.mxu0
    %v951 = vadd.f32 %v902, %v950
    %v952 = vpop.f32.mrf.mxu0
    %v953 = vpop.f32.mrf.mxu0
    %v954 = vadd.f32 %v902, %v953
    %v955 = vpop.f32.mrf.mxu0
    %956 = vmatprep.mubr.bf16.mxu0 0
    %957 = vmatmul.mubr.bf16.gmra.mxu0 %v908
    %v958 = vpop.f32.mrf.mxu0
    %v959 = vadd.f32 %v902, %v958
    %v960 = vpop.f32.mrf.mxu0
    %v961 = vpop.f32.mrf.mxu0
    %v962 = vadd.f32 %v902, %v961
    %v963 = vpop.f32.mrf.mxu0
    %964 = vmatprep.mubr.bf16.mxu0 0
    %965 = vmatmul.mubr.bf16.gmra.mxu0 %v911
    %v966 = vpop.f32.mrf.mxu0
    %v967 = vadd.f32 %v902, %v966
    %v968 = vpop.f32.mrf.mxu0
    %v969 = vpop.f32.mrf.mxu0
    %v970 = vadd.f32 %v902, %v969
    %v971 = vpop.f32.mrf.mxu0
    %972 = vmatprep.mubr.bf16.mxu0 0
    %973 = vmatmul.mubr.bf16.gmra.mxu0 %v914
    %v974 = vpop.f32.mrf.mxu0
    %v975 = vadd.f32 %v902, %v974
    %v976 = vpop.f32.mrf.mxu0
    %v977 = vpop.f32.mrf.mxu0
    %v978 = vadd.f32 %v902, %v977
    %v979 = vpop.f32.mrf.mxu0
    %980 = vdwg.mxu0
    %981 = vst [vmem:[#allocation2] sm:$0xff] %v951
    %982 = vst [vmem:[#allocation2 + $0x8] sm:$0xff] %v954
    %983 = vst [vmem:[#allocation2 + $0x10] sm:$0xff] %v959
    %984 = vst [vmem:[#allocation2 + $0x18] sm:$0xff] %v962
    %985 = vst [vmem:[#allocation2 + $0x20] sm:$0xff] %v967
    %986 = vst [vmem:[#allocation2 + $0x28] sm:$0xff] %v970
    %987 = vst [vmem:[#allocation2 + $0x30] sm:$0xff] %v975
    %988 = vst [vmem:[#allocation2 + $0x38] sm:$0xff] %v978
    %v989 = vld [vmem:[#allocation13] sm:$0xff]
    %v990 = vld [vmem:[#allocation13 + $0x8] sm:$0xff]
    %v991 = vld [vmem:[#allocation13 + $0x10] sm:$0xff]
    %v992 = vld [vmem:[#allocation13 + $0x18] sm:$0xff]
    %v993 = vpack.c.bf16 %v990, %v989
    %v994 = vpack.c.bf16 %v992, %v991
    %s995 = scalar_lea.vmem [#allocation7], 8
    %v996 = vld [vmem:[%s995] sm:$0xff]
    %s997 = scalar_lea.vmem [#allocation9], 8
    %v998 = vld [vmem:[%s997] sm:$0xff]
    %v999 = vld [vmem:[#allocation2] sm:$0xff]
    %v1000 = vpack.c.bf16 %v996, %v996
    %v1002 = vsel %vm154, %v1000, 0
    %1004 = vmatprep.subr.bf16.mxu0 0
    %1005 = vmatpush1.bf16.msra.mxu0 0
    %1006 = vmatprep.subr.bf16.mxu0 0
    %1007 = vmatpush1.bf16.msra.mxu0 0
    %1008 = vmatprep.subr.bf16.mxu0 0
    %1009 = vmatpush1.bf16.msra.mxu0 0
    %1010 = vmatprep.subr.bf16.mxu0 0
    %1011 = vmatpush1.bf16.msra.mxu0 0
    %1012 = vmatprep.subr.bf16.mxu0 0
    %1013 = vmatpush1.bf16.msra.mxu0 0
    %1014 = vmatprep.subr.bf16.mxu0 0
    %1015 = vmatpush1.bf16.msra.mxu0 0
    %1016 = vmatprep.subr.bf16.mxu0 0
    %1017 = vmatpush1.bf16.msra.mxu0 %v994
    %1018 = vmatprep.subr.bf16.mxu0 0
    %1019 = vmatpush1.bf16.msra.mxu0 %v993
    %1020 = vmatprep.subr.bf16.mxu0 0
    %1021 = vmatpush2.bf16.msra.mxu0 0
    %1022 = vmatprep.subr.bf16.mxu0 0
    %1023 = vmatpush2.bf16.msra.mxu0 0
    %1024 = vmatprep.subr.bf16.mxu0 0
    %1025 = vmatpush2.bf16.msra.mxu0 0
    %1026 = vmatprep.subr.bf16.mxu0 0
    %1027 = vmatpush2.bf16.msra.mxu0 0
    %1028 = vmatprep.subr.bf16.mxu0 0
    %1029 = vmatpush2.bf16.msra.mxu0 0
    %1030 = vmatprep.subr.bf16.mxu0 0
    %1031 = vmatpush2.bf16.msra.mxu0 0
    %1032 = vmatprep.subr.bf16.mxu0 0
    %1033 = vmatpush2.bf16.msra.mxu0 0
    %1034 = vmatprep.subr.bf16.mxu0 0
    %1035 = vmatpush2.bf16.msra.mxu0 0
    %1036 = vmatprep.mubr.bf16.mxu0 0
    %1037 = vmatmul.mubr.bf16.gmra.mxu0 %v1002
    %v1038 = vpop.f32.mrf.mxu0
    %v1039 = vadd.f32 0.0, %v1038
    %v1040 = vpop.f32.mrf.mxu0
    %v1041 = vpop.f32.mrf.mxu0
    %v1042 = vpop.f32.mrf.mxu0
    %1043 = vdwg.mxu0
    %v1044 = vadd.f32 %v999, %v1039
    %v1045 = vxor.u32 %v1044, 2147483648
    %v1046 = vmul.f32 %v1045, 1.442695
    %v1047 = vpow.pop %v1046
    %v1048 = vadd.f32 %v1047, 1.0
    %v1049 = vrcp.pop %v1048
    %v1050 = vmul.f32 1.0, %v1049
    %v1051 = vtanh.pop %v1044
    %1053 = vrot.lane.b32.xlu0 %v998, 32
    %v1054 = vpop.permute.xlu0 %1053
    %v1056 = vmul.f32 %v1050, %v1054
    %1058 = vrot.lane.b32.xlu0 %v1051, 64
    %v1059 = vpop.permute.xlu0 %1058
    %v1061 = vmul.f32 %v1050, %v1059
    %1063 = vrot.lane.b32.xlu0 %v1061, 32
    %v1064 = vpop.permute.xlu0 %1063
    %v1066 = vadd.f32 %v1056, %v1064
    %v1067 = vtanh.pop %v1066
    %1069 = vrot.lane.b32.xlu0 %v1067, 64
    %v1070 = vpop.permute.xlu0 %1069
    %v1072 = vmul.f32 %v1050, %v1070
    %1074 = vrot.lane.b32.xlu0 %v1072, 32
    %v1075 = vpop.permute.xlu0 %1074
    %1077 = vst.msk [vmem:[%s11] sm:$0xff] %vm154, %v1075
    %v1078 = vld [vmem:[#allocation2 + $0x8] sm:$0xff]
    %v1079 = vpack.c.bf16 %v1072, %v1072
    %1081 = vrot.lane.b32.xlu0 %v1079, 32
    %v1082 = vpop.permute.xlu0 %1081
    %v1084 = vsel %vm154, %v1082, 0
    %1086 = vmatprep.subr.bf16.mxu0 0
    %1087 = vmatpush1.bf16.msra.mxu0 0
    %1088 = vmatprep.subr.bf16.mxu0 0
    %1089 = vmatpush1.bf16.msra.mxu0 0
    %1090 = vmatprep.subr.bf16.mxu0 0
    %1091 = vmatpush1.bf16.msra.mxu0 0
    %1092 = vmatprep.subr.bf16.mxu0 0
    %1093 = vmatpush1.bf16.msra.mxu0 0
    %1094 = vmatprep.subr.bf16.mxu0 0
    %1095 = vmatpush1.bf16.msra.mxu0 0
    %1096 = vmatprep.subr.bf16.mxu0 0
    %1097 = vmatpush1.bf16.msra.mxu0 0
    %1098 = vmatprep.subr.bf16.mxu0 0
    %1099 = vmatpush1.bf16.msra.mxu0 %v994
    %1100 = vmatprep.subr.bf16.mxu0 0
    %1101 = vmatpush1.bf16.msra.mxu0 %v993
    %1102 = vmatprep.subr.bf16.mxu0 0
    %1103 = vmatpush2.bf16.msra.mxu0 0
    %1104 = vmatprep.subr.bf16.mxu0 0
    %1105 = vmatpush2.bf16.msra.mxu0 0
    %1106 = vmatprep.subr.bf16.mxu0 0
    %1107 = vmatpush2.bf16.msra.mxu0 0
    %1108 = vmatprep.subr.bf16.mxu0 0
    %1109 = vmatpush2.bf16.msra.mxu0 0
    %1110 = vmatprep.subr.bf16.mxu0 0
    %1111 = vmatpush2.bf16.msra.mxu0 0
    %1112 = vmatprep.subr.bf16.mxu0 0
    %1113 = vmatpush2.bf16.msra.mxu0 0
    %1114 = vmatprep.subr.bf16.mxu0 0
    %1115 = vmatpush2.bf16.msra.mxu0 0
    %1116 = vmatprep.subr.bf16.mxu0 0
    %1117 = vmatpush2.bf16.msra.mxu0 0
    %1118 = vmatprep.mubr.bf16.mxu0 0
    %1119 = vmatmul.mubr.bf16.gmra.mxu0 %v1084
    %v1120 = vpop.f32.mrf.mxu0
    %v1121 = vadd.f32 0.0, %v1120
    %v1122 = vpop.f32.mrf.mxu0
    %v1123 = vpop.f32.mrf.mxu0
    %v1124 = vpop.f32.mrf.mxu0
    %1125 = vdwg.mxu0
    %v1126 = vadd.f32 %v1078, %v1121
    %v1127 = vxor.u32 %v1126, 2147483648
    %v1128 = vmul.f32 %v1127, 1.442695
    %v1129 = vpow.pop %v1128
    %v1130 = vadd.f32 %v1129, 1.0
    %v1131 = vrcp.pop %v1130
    %v1132 = vmul.f32 1.0, %v1131
    %v1133 = vtanh.pop %v1126
    %v1134 = vmul.f32 %v1132, %v1066
    %1136 = vrot.lane.b32.xlu0 %v1133, 64
    %v1137 = vpop.permute.xlu0 %1136
    %v1139 = vmul.f32 %v1132, %v1137
    %1141 = vrot.lane.b32.xlu0 %v1139, 32
    %v1142 = vpop.permute.xlu0 %1141
    %v1144 = vadd.f32 %v1134, %v1142
    %v1145 = vtanh.pop %v1144
    %1147 = vrot.lane.b32.xlu0 %v1145, 64
    %v1148 = vpop.permute.xlu0 %1147
    %v1150 = vmul.f32 %v1132, %v1148
    %1152 = vrot.lane.b32.xlu0 %v1150, 32
    %v1153 = vpop.permute.xlu0 %1152
    %1155 = vst.msk [vmem:[%s11 + $0x8] sm:$0xff] %vm154, %v1153
    %v1156 = vld [vmem:[#allocation2 + $0x10] sm:$0xff]
    %v1157 = vpack.c.bf16 %v1150, %v1150
    %1159 = vrot.lane.b32.xlu0 %v1157, 32
    %v1160 = vpop.permute.xlu0 %1159
    %v1162 = vsel %vm154, %v1160, 0
    %1164 = vmatprep.subr.bf16.mxu0 0
    %1165 = vmatpush1.bf16.msra.mxu0 0
    %1166 = vmatprep.subr.bf16.mxu0 0
    %1167 = vmatpush1.bf16.msra.mxu0 0
    %1168 = vmatprep.subr.bf16.mxu0 0
    %1169 = vmatpush1.bf16.msra.mxu0 0
    %1170 = vmatprep.subr.bf16.mxu0 0
    %1171 = vmatpush1.bf16.msra.mxu0 0
    %1172 = vmatprep.subr.bf16.mxu0 0
    %1173 = vmatpush1.bf16.msra.mxu0 0
    %1174 = vmatprep.subr.bf16.mxu0 0
    %1175 = vmatpush1.bf16.msra.mxu0 0
    %1176 = vmatprep.subr.bf16.mxu0 0
    %1177 = vmatpush1.bf16.msra.mxu0 %v994
    %1178 = vmatprep.subr.bf16.mxu0 0
    %1179 = vmatpush1.bf16.msra.mxu0 %v993
    %1180 = vmatprep.subr.bf16.mxu0 0
    %1181 = vmatpush2.bf16.msra.mxu0 0
    %1182 = vmatprep.subr.bf16.mxu0 0
    %1183 = vmatpush2.bf16.msra.mxu0 0
    %1184 = vmatprep.subr.bf16.mxu0 0
    %1185 = vmatpush2.bf16.msra.mxu0 0
    %1186 = vmatprep.subr.bf16.mxu0 0
    %1187 = vmatpush2.bf16.msra.mxu0 0
    %1188 = vmatprep.subr.bf16.mxu0 0
    %1189 = vmatpush2.bf16.msra.mxu0 0
    %1190 = vmatprep.subr.bf16.mxu0 0
    %1191 = vmatpush2.bf16.msra.mxu0 0
    %1192 = vmatprep.subr.bf16.mxu0 0
    %1193 = vmatpush2.bf16.msra.mxu0 0
    %1194 = vmatprep.subr.bf16.mxu0 0
    %1195 = vmatpush2.bf16.msra.mxu0 0
    %1196 = vmatprep.mubr.bf16.mxu0 0
    %1197 = vmatmul.mubr.bf16.gmra.mxu0 %v1162
    %v1198 = vpop.f32.mrf.mxu0
    %v1199 = vadd.f32 0.0, %v1198
    %v1200 = vpop.f32.mrf.mxu0
    %v1201 = vpop.f32.mrf.mxu0
    %v1202 = vpop.f32.mrf.mxu0
    %1203 = vdwg.mxu0
    %v1204 = vadd.f32 %v1156, %v1199
    %v1205 = vxor.u32 %v1204, 2147483648
    %v1206 = vmul.f32 %v1205, 1.442695
    %v1207 = vpow.pop %v1206
    %v1208 = vadd.f32 %v1207, 1.0
    %v1209 = vrcp.pop %v1208
    %v1210 = vmul.f32 1.0, %v1209
    %v1211 = vtanh.pop %v1204
    %v1212 = vmul.f32 %v1210, %v1144
    %1214 = vrot.lane.b32.xlu0 %v1211, 64
    %v1215 = vpop.permute.xlu0 %1214
    %v1217 = vmul.f32 %v1210, %v1215
    %1219 = vrot.lane.b32.xlu0 %v1217, 32
    %v1220 = vpop.permute.xlu0 %1219
    %v1222 = vadd.f32 %v1212, %v1220
    %v1223 = vtanh.pop %v1222
    %1225 = vrot.lane.b32.xlu0 %v1223, 64
    %v1226 = vpop.permute.xlu0 %1225
    %v1228 = vmul.f32 %v1210, %v1226
    %1230 = vrot.lane.b32.xlu0 %v1228, 32
    %v1231 = vpop.permute.xlu0 %1230
    %1233 = vst.msk [vmem:[%s11 + $0x10] sm:$0xff] %vm154, %v1231
    %v1234 = vld [vmem:[#allocation2 + $0x18] sm:$0xff]
    %v1235 = vpack.c.bf16 %v1228, %v1228
    %1237 = vrot.lane.b32.xlu0 %v1235, 32
    %v1238 = vpop.permute.xlu0 %1237
    %v1240 = vsel %vm154, %v1238, 0
    %1242 = vmatprep.subr.bf16.mxu0 0
    %1243 = vmatpush1.bf16.msra.mxu0 0
    %1244 = vmatprep.subr.bf16.mxu0 0
    %1245 = vmatpush1.bf16.msra.mxu0 0
    %1246 = vmatprep.subr.bf16.mxu0 0
    %1247 = vmatpush1.bf16.msra.mxu0 0
    %1248 = vmatprep.subr.bf16.mxu0 0
    %1249 = vmatpush1.bf16.msra.mxu0 0
    %1250 = vmatprep.subr.bf16.mxu0 0
    %1251 = vmatpush1.bf16.msra.mxu0 0
    %1252 = vmatprep.subr.bf16.mxu0 0
    %1253 = vmatpush1.bf16.msra.mxu0 0
    %1254 = vmatprep.subr.bf16.mxu0 0
    %1255 = vmatpush1.bf16.msra.mxu0 %v994
    %1256 = vmatprep.subr.bf16.mxu0 0
    %1257 = vmatpush1.bf16.msra.mxu0 %v993
    %1258 = vmatprep.subr.bf16.mxu0 0
    %1259 = vmatpush2.bf16.msra.mxu0 0
    %1260 = vmatprep.subr.bf16.mxu0 0
    %1261 = vmatpush2.bf16.msra.mxu0 0
    %1262 = vmatprep.subr.bf16.mxu0 0
    %1263 = vmatpush2.bf16.msra.mxu0 0
    %1264 = vmatprep.subr.bf16.mxu0 0
    %1265 = vmatpush2.bf16.msra.mxu0 0
    %1266 = vmatprep.subr.bf16.mxu0 0
    %1267 = vmatpush2.bf16.msra.mxu0 0
    %1268 = vmatprep.subr.bf16.mxu0 0
    %1269 = vmatpush2.bf16.msra.mxu0 0
    %1270 = vmatprep.subr.bf16.mxu0 0
    %1271 = vmatpush2.bf16.msra.mxu0 0
    %1272 = vmatprep.subr.bf16.mxu0 0
    %1273 = vmatpush2.bf16.msra.mxu0 0
    %1274 = vmatprep.mubr.bf16.mxu0 0
    %1275 = vmatmul.mubr.bf16.gmra.mxu0 %v1240
    %v1276 = vpop.f32.mrf.mxu0
    %v1277 = vadd.f32 0.0, %v1276
    %v1278 = vpop.f32.mrf.mxu0
    %v1279 = vpop.f32.mrf.mxu0
    %v1280 = vpop.f32.mrf.mxu0
    %1281 = vdwg.mxu0
    %v1282 = vadd.f32 %v1234, %v1277
    %v1283 = vxor.u32 %v1282, 2147483648
    %v1284 = vmul.f32 %v1283, 1.442695
    %v1285 = vpow.pop %v1284
    %v1286 = vadd.f32 %v1285, 1.0
    %v1287 = vrcp.pop %v1286
    %v1288 = vmul.f32 1.0, %v1287
    %v1289 = vtanh.pop %v1282
    %v1290 = vmul.f32 %v1288, %v1222
    %1292 = vrot.lane.b32.xlu0 %v1289, 64
    %v1293 = vpop.permute.xlu0 %1292
    %v1295 = vmul.f32 %v1288, %v1293
    %1297 = vrot.lane.b32.xlu0 %v1295, 32
    %v1298 = vpop.permute.xlu0 %1297
    %v1300 = vadd.f32 %v1290, %v1298
    %v1301 = vtanh.pop %v1300
    %1303 = vrot.lane.b32.xlu0 %v1301, 64
    %v1304 = vpop.permute.xlu0 %1303
    %v1306 = vmul.f32 %v1288, %v1304
    %1308 = vrot.lane.b32.xlu0 %v1306, 32
    %v1309 = vpop.permute.xlu0 %1308
    %1311 = vst.msk [vmem:[%s11 + $0x18] sm:$0xff] %vm154, %v1309
    %v1312 = vld [vmem:[#allocation2 + $0x20] sm:$0xff]
    %v1313 = vpack.c.bf16 %v1306, %v1306
    %1315 = vrot.lane.b32.xlu0 %v1313, 32
    %v1316 = vpop.permute.xlu0 %1315
    %v1318 = vsel %vm154, %v1316, 0
    %1320 = vmatprep.subr.bf16.mxu0 0
    %1321 = vmatpush1.bf16.msra.mxu0 0
    %1322 = vmatprep.subr.bf16.mxu0 0
    %1323 = vmatpush1.bf16.msra.mxu0 0
    %1324 = vmatprep.subr.bf16.mxu0 0
    %1325 = vmatpush1.bf16.msra.mxu0 0
    %1326 = vmatprep.subr.bf16.mxu0 0
    %1327 = vmatpush1.bf16.msra.mxu0 0
    %1328 = vmatprep.subr.bf16.mxu0 0
    %1329 = vmatpush1.bf16.msra.mxu0 0
    %1330 = vmatprep.subr.bf16.mxu0 0
    %1331 = vmatpush1.bf16.msra.mxu0 0
    %1332 = vmatprep.subr.bf16.mxu0 0
    %1333 = vmatpush1.bf16.msra.mxu0 %v994
    %1334 = vmatprep.subr.bf16.mxu0 0
    %1335 = vmatpush1.bf16.msra.mxu0 %v993
    %1336 = vmatprep.subr.bf16.mxu0 0
    %1337 = vmatpush2.bf16.msra.mxu0 0
    %1338 = vmatprep.subr.bf16.mxu0 0
    %1339 = vmatpush2.bf16.msra.mxu0 0
    %1340 = vmatprep.subr.bf16.mxu0 0
    %1341 = vmatpush2.bf16.msra.mxu0 0
    %1342 = vmatprep.subr.bf16.mxu0 0
    %1343 = vmatpush2.bf16.msra.mxu0 0
    %1344 = vmatprep.subr.bf16.mxu0 0
    %1345 = vmatpush2.bf16.msra.mxu0 0
    %1346 = vmatprep.subr.bf16.mxu0 0
    %1347 = vmatpush2.bf16.msra.mxu0 0
    %1348 = vmatprep.subr.bf16.mxu0 0
    %1349 = vmatpush2.bf16.msra.mxu0 0
    %1350 = vmatprep.subr.bf16.mxu0 0
    %1351 = vmatpush2.bf16.msra.mxu0 0
    %1352 = vmatprep.mubr.bf16.mxu0 0
    %1353 = vmatmul.mubr.bf16.gmra.mxu0 %v1318
    %v1354 = vpop.f32.mrf.mxu0
    %v1355 = vadd.f32 0.0, %v1354
    %v1356 = vpop.f32.mrf.mxu0
    %v1357 = vpop.f32.mrf.mxu0
    %v1358 = vpop.f32.mrf.mxu0
    %1359 = vdwg.mxu0
    %v1360 = vadd.f32 %v1312, %v1355
    %v1361 = vxor.u32 %v1360, 2147483648
    %v1362 = vmul.f32 %v1361, 1.442695
    %v1363 = vpow.pop %v1362
    %v1364 = vadd.f32 %v1363, 1.0
    %v1365 = vrcp.pop %v1364
    %v1366 = vmul.f32 1.0, %v1365
    %v1367 = vtanh.pop %v1360
    %v1368 = vmul.f32 %v1366, %v1300
    %1370 = vrot.lane.b32.xlu0 %v1367, 64
    %v1371 = vpop.permute.xlu0 %1370
    %v1373 = vmul.f32 %v1366, %v1371
    %1375 = vrot.lane.b32.xlu0 %v1373, 32
    %v1376 = vpop.permute.xlu0 %1375
    %v1378 = vadd.f32 %v1368, %v1376
    %v1379 = vtanh.pop %v1378
    %1381 = vrot.lane.b32.xlu0 %v1379, 64
    %v1382 = vpop.permute.xlu0 %1381
    %v1384 = vmul.f32 %v1366, %v1382
    %1386 = vrot.lane.b32.xlu0 %v1384, 32
    %v1387 = vpop.permute.xlu0 %1386
    %1389 = vst.msk [vmem:[%s11 + $0x20] sm:$0xff] %vm154, %v1387
    %v1390 = vld [vmem:[#allocation2 + $0x28] sm:$0xff]
    %v1391 = vpack.c.bf16 %v1384, %v1384
    %1393 = vrot.lane.b32.xlu0 %v1391, 32
    %v1394 = vpop.permute.xlu0 %1393
    %v1396 = vsel %vm154, %v1394, 0
    %1398 = vmatprep.subr.bf16.mxu0 0
    %1399 = vmatpush1.bf16.msra.mxu0 0
    %1400 = vmatprep.subr.bf16.mxu0 0
    %1401 = vmatpush1.bf16.msra.mxu0 0
    %1402 = vmatprep.subr.bf16.mxu0 0
    %1403 = vmatpush1.bf16.msra.mxu0 0
    %1404 = vmatprep.subr.bf16.mxu0 0
    %1405 = vmatpush1.bf16.msra.mxu0 0
    %1406 = vmatprep.subr.bf16.mxu0 0
    %1407 = vmatpush1.bf16.msra.mxu0 0
    %1408 = vmatprep.subr.bf16.mxu0 0
    %1409 = vmatpush1.bf16.msra.mxu0 0
    %1410 = vmatprep.subr.bf16.mxu0 0
    %1411 = vmatpush1.bf16.msra.mxu0 %v994
    %1412 = vmatprep.subr.bf16.mxu0 0
    %1413 = vmatpush1.bf16.msra.mxu0 %v993
    %1414 = vmatprep.subr.bf16.mxu0 0
    %1415 = vmatpush2.bf16.msra.mxu0 0
    %1416 = vmatprep.subr.bf16.mxu0 0
    %1417 = vmatpush2.bf16.msra.mxu0 0
    %1418 = vmatprep.subr.bf16.mxu0 0
    %1419 = vmatpush2.bf16.msra.mxu0 0
    %1420 = vmatprep.subr.bf16.mxu0 0
    %1421 = vmatpush2.bf16.msra.mxu0 0
    %1422 = vmatprep.subr.bf16.mxu0 0
    %1423 = vmatpush2.bf16.msra.mxu0 0
    %1424 = vmatprep.subr.bf16.mxu0 0
    %1425 = vmatpush2.bf16.msra.mxu0 0
    %1426 = vmatprep.subr.bf16.mxu0 0
    %1427 = vmatpush2.bf16.msra.mxu0 0
    %1428 = vmatprep.subr.bf16.mxu0 0
    %1429 = vmatpush2.bf16.msra.mxu0 0
    %1430 = vmatprep.mubr.bf16.mxu0 0
    %1431 = vmatmul.mubr.bf16.gmra.mxu0 %v1396
    %v1432 = vpop.f32.mrf.mxu0
    %v1433 = vadd.f32 0.0, %v1432
    %v1434 = vpop.f32.mrf.mxu0
    %v1435 = vpop.f32.mrf.mxu0
    %v1436 = vpop.f32.mrf.mxu0
    %1437 = vdwg.mxu0
    %v1438 = vadd.f32 %v1390, %v1433
    %v1439 = vxor.u32 %v1438, 2147483648
    %v1440 = vmul.f32 %v1439, 1.442695
    %v1441 = vpow.pop %v1440
    %v1442 = vadd.f32 %v1441, 1.0
    %v1443 = vrcp.pop %v1442
    %v1444 = vmul.f32 1.0, %v1443
    %v1445 = vtanh.pop %v1438
    %v1446 = vmul.f32 %v1444, %v1378
    %1448 = vrot.lane.b32.xlu0 %v1445, 64
    %v1449 = vpop.permute.xlu0 %1448
    %v1451 = vmul.f32 %v1444, %v1449
    %1453 = vrot.lane.b32.xlu0 %v1451, 32
    %v1454 = vpop.permute.xlu0 %1453
    %v1456 = vadd.f32 %v1446, %v1454
    %v1457 = vtanh.pop %v1456
    %1459 = vrot.lane.b32.xlu0 %v1457, 64
    %v1460 = vpop.permute.xlu0 %1459
    %v1462 = vmul.f32 %v1444, %v1460
    %1464 = vrot.lane.b32.xlu0 %v1462, 32
    %v1465 = vpop.permute.xlu0 %1464
    %1467 = vst.msk [vmem:[%s11 + $0x28] sm:$0xff] %vm154, %v1465
    %v1468 = vld [vmem:[#allocation2 + $0x30] sm:$0xff]
    %v1469 = vpack.c.bf16 %v1462, %v1462
    %1471 = vrot.lane.b32.xlu0 %v1469, 32
    %v1472 = vpop.permute.xlu0 %1471
    %v1474 = vsel %vm154, %v1472, 0
    %1476 = vmatprep.subr.bf16.mxu0 0
    %1477 = vmatpush1.bf16.msra.mxu0 0
    %1478 = vmatprep.subr.bf16.mxu0 0
    %1479 = vmatpush1.bf16.msra.mxu0 0
    %1480 = vmatprep.subr.bf16.mxu0 0
    %1481 = vmatpush1.bf16.msra.mxu0 0
    %1482 = vmatprep.subr.bf16.mxu0 0
    %1483 = vmatpush1.bf16.msra.mxu0 0
    %1484 = vmatprep.subr.bf16.mxu0 0
    %1485 = vmatpush1.bf16.msra.mxu0 0
    %1486 = vmatprep.subr.bf16.mxu0 0
    %1487 = vmatpush1.bf16.msra.mxu0 0
    %1488 = vmatprep.subr.bf16.mxu0 0
    %1489 = vmatpush1.bf16.msra.mxu0 %v994
    %1490 = vmatprep.subr.bf16.mxu0 0
    %1491 = vmatpush1.bf16.msra.mxu0 %v993
    %1492 = vmatprep.subr.bf16.mxu0 0
    %1493 = vmatpush2.bf16.msra.mxu0 0
    %1494 = vmatprep.subr.bf16.mxu0 0
    %1495 = vmatpush2.bf16.msra.mxu0 0
    %1496 = vmatprep.subr.bf16.mxu0 0
    %1497 = vmatpush2.bf16.msra.mxu0 0
    %1498 = vmatprep.subr.bf16.mxu0 0
    %1499 = vmatpush2.bf16.msra.mxu0 0
    %1500 = vmatprep.subr.bf16.mxu0 0
    %1501 = vmatpush2.bf16.msra.mxu0 0
    %1502 = vmatprep.subr.bf16.mxu0 0
    %1503 = vmatpush2.bf16.msra.mxu0 0
    %1504 = vmatprep.subr.bf16.mxu0 0
    %1505 = vmatpush2.bf16.msra.mxu0 0
    %1506 = vmatprep.subr.bf16.mxu0 0
    %1507 = vmatpush2.bf16.msra.mxu0 0
    %1508 = vmatprep.mubr.bf16.mxu0 0
    %1509 = vmatmul.mubr.bf16.gmra.mxu0 %v1474
    %v1510 = vpop.f32.mrf.mxu0
    %v1511 = vadd.f32 0.0, %v1510
    %v1512 = vpop.f32.mrf.mxu0
    %v1513 = vpop.f32.mrf.mxu0
    %v1514 = vpop.f32.mrf.mxu0
    %1515 = vdwg.mxu0
    %v1516 = vadd.f32 %v1468, %v1511
    %v1517 = vxor.u32 %v1516, 2147483648
    %v1518 = vmul.f32 %v1517, 1.442695
    %v1519 = vpow.pop %v1518
    %v1520 = vadd.f32 %v1519, 1.0
    %v1521 = vrcp.pop %v1520
    %v1522 = vmul.f32 1.0, %v1521
    %v1523 = vtanh.pop %v1516
    %v1524 = vmul.f32 %v1522, %v1456
    %1526 = vrot.lane.b32.xlu0 %v1523, 64
    %v1527 = vpop.permute.xlu0 %1526
    %v1529 = vmul.f32 %v1522, %v1527
    %1531 = vrot.lane.b32.xlu0 %v1529, 32
    %v1532 = vpop.permute.xlu0 %1531
    %v1534 = vadd.f32 %v1524, %v1532
    %v1535 = vtanh.pop %v1534
    %1537 = vrot.lane.b32.xlu0 %v1535, 64
    %v1538 = vpop.permute.xlu0 %1537
    %v1540 = vmul.f32 %v1522, %v1538
    %1542 = vrot.lane.b32.xlu0 %v1540, 32
    %v1543 = vpop.permute.xlu0 %1542
    %1545 = vst.msk [vmem:[%s11 + $0x30] sm:$0xff] %vm154, %v1543
    %v1546 = vld [vmem:[#allocation2 + $0x38] sm:$0xff]
    %v1547 = vpack.c.bf16 %v1540, %v1540
    %1549 = vrot.lane.b32.xlu0 %v1547, 32
    %v1550 = vpop.permute.xlu0 %1549
    %v1552 = vsel %vm154, %v1550, 0
    %1554 = vmatprep.subr.bf16.mxu0 0
    %1555 = vmatpush1.bf16.msra.mxu0 0
    %1556 = vmatprep.subr.bf16.mxu0 0
    %1557 = vmatpush1.bf16.msra.mxu0 0
    %1558 = vmatprep.subr.bf16.mxu0 0
    %1559 = vmatpush1.bf16.msra.mxu0 0
    %1560 = vmatprep.subr.bf16.mxu0 0
    %1561 = vmatpush1.bf16.msra.mxu0 0
    %1562 = vmatprep.subr.bf16.mxu0 0
    %1563 = vmatpush1.bf16.msra.mxu0 0
    %1564 = vmatprep.subr.bf16.mxu0 0
    %1565 = vmatpush1.bf16.msra.mxu0 0
    %1566 = vmatprep.subr.bf16.mxu0 0
    %1567 = vmatpush1.bf16.msra.mxu0 %v994
    %1568 = vmatprep.subr.bf16.mxu0 0
    %1569 = vmatpush1.bf16.msra.mxu0 %v993
    %1570 = vmatprep.subr.bf16.mxu0 0
    %1571 = vmatpush2.bf16.msra.mxu0 0
    %1572 = vmatprep.subr.bf16.mxu0 0
    %1573 = vmatpush2.bf16.msra.mxu0 0
    %1574 = vmatprep.subr.bf16.mxu0 0
    %1575 = vmatpush2.bf16.msra.mxu0 0
    %1576 = vmatprep.subr.bf16.mxu0 0
    %1577 = vmatpush2.bf16.msra.mxu0 0
    %1578 = vmatprep.subr.bf16.mxu0 0
    %1579 = vmatpush2.bf16.msra.mxu0 0
    %1580 = vmatprep.subr.bf16.mxu0 0
    %1581 = vmatpush2.bf16.msra.mxu0 0
    %1582 = vmatprep.subr.bf16.mxu0 0
    %1583 = vmatpush2.bf16.msra.mxu0 0
    %1584 = vmatprep.subr.bf16.mxu0 0
    %1585 = vmatpush2.bf16.msra.mxu0 0
    %1586 = vmatprep.mubr.bf16.mxu0 0
    %1587 = vmatmul.mubr.bf16.gmra.mxu0 %v1552
    %v1588 = vpop.f32.mrf.mxu0
    %v1589 = vadd.f32 0.0, %v1588
    %v1590 = vpop.f32.mrf.mxu0
    %v1591 = vpop.f32.mrf.mxu0
    %v1592 = vpop.f32.mrf.mxu0
    %1593 = vdwg.mxu0
    %v1594 = vadd.f32 %v1546, %v1589
    %v1595 = vxor.u32 %v1594, 2147483648
    %v1596 = vmul.f32 %v1595, 1.442695
    %v1597 = vpow.pop %v1596
    %v1598 = vadd.f32 %v1597, 1.0
    %v1599 = vrcp.pop %v1598
    %v1600 = vmul.f32 1.0, %v1599
    %v1601 = vtanh.pop %v1594
    %v1602 = vmul.f32 %v1600, %v1534
    %1604 = vrot.lane.b32.xlu0 %v1601, 64
    %v1605 = vpop.permute.xlu0 %1604
    %v1607 = vmul.f32 %v1600, %v1605
    %1609 = vrot.lane.b32.xlu0 %v1607, 32
    %v1610 = vpop.permute.xlu0 %1609
    %v1612 = vadd.f32 %v1602, %v1610
    %v1613 = vtanh.pop %v1612
    %1615 = vrot.lane.b32.xlu0 %v1613, 64
    %v1616 = vpop.permute.xlu0 %1615
    %v1618 = vmul.f32 %v1600, %v1616
    %1620 = vrot.lane.b32.xlu0 %v1618, 32
    %v1621 = vpop.permute.xlu0 %1620
    %1623 = vst.msk [vmem:[%s11 + $0x38] sm:$0xff] %vm154, %v1621
    %s1624 = scalar_lea.vmem [#allocation15], 8
    %1625 = vst.msk [vmem:[%s1624] sm:$0xff] %vm154, %v1621
    %1627 = vrot.lane.b32.xlu0 %v1612, 96
    %v1628 = vpop.permute.xlu0 %1627
    %s1630 = scalar_lea.vmem [#allocation16], 8
    %1631 = vst.msk [vmem:[%s1630] sm:$0xff] %vm154, %v1628
    %v1632 = vld [vmem:[%s11] sm:$0xff]
    %v1633 = vld [vmem:[%s11 + $0x8] sm:$0xff]
    %v1634 = vld [vmem:[%s11 + $0x10] sm:$0xff]
    %v1635 = vld [vmem:[%s11 + $0x18] sm:$0xff]
    %v1636 = vld [vmem:[%s11 + $0x20] sm:$0xff]
    %v1637 = vld [vmem:[%s11 + $0x28] sm:$0xff]
    %v1638 = vld [vmem:[%s11 + $0x30] sm:$0xff]
    %v1639 = vld [vmem:[%s11 + $0x38] sm:$0xff]
    %v1640 = vld [vmem:[%s9] sm:$0xff]
    %v1641 = vld [vmem:[%s9 + $0x8] sm:$0xff]
    %v1642 = vld [vmem:[%s9 + $0x10] sm:$0xff]
    %v1643 = vld [vmem:[%s9 + $0x18] sm:$0xff]
    %v1644 = vld [vmem:[#allocation3] sm:$0x1]
    %v1646 = vlaneseq
    %v1647 = vshrl.u32 %v1646, 7
    %v1648 = vsub.s32 0, %v1647
    %v1649 = vrot.slane %v1644, %v1648
    %v1652 = vsel %vm154, %v1632, 0
    %v1655 = vsel %vm154, %v1633, 0
    %v1658 = vsel %vm154, %v1634, 0
    %v1661 = vsel %vm154, %v1635, 0
    %v1664 = vsel %vm154, %v1636, 0
    %v1667 = vsel %vm154, %v1637, 0
    %v1670 = vsel %vm154, %v1638, 0
    %v1673 = vsel %vm154, %v1639, 0
    %1675 = vmatprep.subr.mxu0 0.0
    %1676 = vmatpush1.msra.mxu0 0.0
    %1677 = vmatprep.subr.mxu0 0.0
    %1678 = vmatpush1.msra.mxu0 0.0
    %1679 = vmatprep.subr.mxu0 0.0
    %1680 = vmatpush1.msra.mxu0 0.0
    %1681 = vmatprep.subr.mxu0 0.0
    %1682 = vmatpush1.msra.mxu0 0.0
    %1683 = vmatprep.subr.mxu0 0.0
    %1684 = vmatpush1.msra.mxu0 0.0
    %1685 = vmatprep.subr.mxu0 0.0
    %1686 = vmatpush1.msra.mxu0 0.0
    %1687 = vmatprep.subr.mxu0 0.0
    %1688 = vmatpush1.msra.mxu0 0.0
    %1689 = vmatprep.subr.mxu0 0.0
    %1690 = vmatpush1.msra.mxu0 0.0
    %1691 = vmatprep.subr.mxu0 0.0
    %1692 = vmatpush1.msra.mxu0 0.0
    %1693 = vmatprep.subr.mxu0 0.0
    %1694 = vmatpush1.msra.mxu0 0.0
    %1695 = vmatprep.subr.mxu0 0.0
    %1696 = vmatpush1.msra.mxu0 0.0
    %1697 = vmatprep.subr.mxu0 0.0
    %1698 = vmatpush1.msra.mxu0 0.0
    %1699 = vmatprep.subr.mxu0 0.0
    %1700 = vmatpush1.msra.mxu0 %v1643
    %1701 = vmatprep.subr.mxu0 0.0
    %1702 = vmatpush1.msra.mxu0 %v1642
    %1703 = vmatprep.subr.mxu0 0.0
    %1704 = vmatpush1.msra.mxu0 %v1641
    %1705 = vmatprep.subr.mxu0 0.0
    %1706 = vmatpush1.msra.mxu0 %v1640
    %1707 = vmatprep.subr.mxu0 0.0
    %1708 = vmatpush2.msra.mxu0 0.0
    %1709 = vmatprep.subr.mxu0 0.0
    %1710 = vmatpush2.msra.mxu0 0.0
    %1711 = vmatprep.subr.mxu0 0.0
    %1712 = vmatpush2.msra.mxu0 0.0
    %1713 = vmatprep.subr.mxu0 0.0
    %1714 = vmatpush2.msra.mxu0 0.0
    %1715 = vmatprep.subr.mxu0 0.0
    %1716 = vmatpush2.msra.mxu0 0.0
    %1717 = vmatprep.subr.mxu0 0.0
    %1718 = vmatpush2.msra.mxu0 0.0
    %1719 = vmatprep.subr.mxu0 0.0
    %1720 = vmatpush2.msra.mxu0 0.0
    %1721 = vmatprep.subr.mxu0 0.0
    %1722 = vmatpush2.msra.mxu0 0.0
    %1723 = vmatprep.subr.mxu0 0.0
    %1724 = vmatpush2.msra.mxu0 0.0
    %1725 = vmatprep.subr.mxu0 0.0
    %1726 = vmatpush2.msra.mxu0 0.0
    %1727 = vmatprep.subr.mxu0 0.0
    %1728 = vmatpush2.msra.mxu0 0.0
    %1729 = vmatprep.subr.mxu0 0.0
    %1730 = vmatpush2.msra.mxu0 0.0
    %1731 = vmatprep.subr.mxu0 0.0
    %1732 = vmatpush2.msra.mxu0 0.0
    %1733 = vmatprep.subr.mxu0 0.0
    %1734 = vmatpush2.msra.mxu0 0.0
    %1735 = vmatprep.subr.mxu0 0.0
    %1736 = vmatpush2.msra.mxu0 0.0
    %1737 = vmatprep.subr.mxu0 0.0
    %1738 = vmatpush2.msra.mxu0 0.0
    %1739 = vmatprep.mubr.f32.mxu0 0.0
    %1740 = vmatmul.mubr.f32.gmra.mxu0 %v1652
    %v1741 = vpop.f32.mrf.mxu0
    %v1742 = vadd.f32 %v1649, %v1741
    %v1743 = vpop.f32.mrf.mxu0
    %1744 = vmatprep.mubr.f32.mxu0 0.0
    %1745 = vmatmul.mubr.f32.gmra.mxu0 %v1655
    %v1746 = vpop.f32.mrf.mxu0
    %v1747 = vadd.f32 %v1649, %v1746
    %v1748 = vpop.f32.mrf.mxu0
    %1749 = vmatprep.mubr.f32.mxu0 0.0
    %1750 = vmatmul.mubr.f32.gmra.mxu0 %v1658
    %v1751 = vpop.f32.mrf.mxu0
    %v1752 = vadd.f32 %v1649, %v1751
    %v1753 = vpop.f32.mrf.mxu0
    %1754 = vmatprep.mubr.f32.mxu0 0.0
    %1755 = vmatmul.mubr.f32.gmra.mxu0 %v1661
    %v1756 = vpop.f32.mrf.mxu0
    %v1757 = vadd.f32 %v1649, %v1756
    %v1758 = vpop.f32.mrf.mxu0
    %1759 = vmatprep.mubr.f32.mxu0 0.0
    %1760 = vmatmul.mubr.f32.gmra.mxu0 %v1664
    %v1761 = vpop.f32.mrf.mxu0
    %v1762 = vadd.f32 %v1649, %v1761
    %v1763 = vpop.f32.mrf.mxu0
    %1764 = vmatprep.mubr.f32.mxu0 0.0
    %1765 = vmatmul.mubr.f32.gmra.mxu0 %v1667
    %v1766 = vpop.f32.mrf.mxu0
    %v1767 = vadd.f32 %v1649, %v1766
    %v1768 = vpop.f32.mrf.mxu0
    %1769 = vmatprep.mubr.f32.mxu0 0.0
    %1770 = vmatmul.mubr.f32.gmra.mxu0 %v1670
    %v1771 = vpop.f32.mrf.mxu0
    %v1772 = vadd.f32 %v1649, %v1771
    %v1773 = vpop.f32.mrf.mxu0
    %1774 = vmatprep.mubr.f32.mxu0 0.0
    %1775 = vmatmul.mubr.f32.gmra.mxu0 %v1673
    %v1776 = vpop.f32.mrf.mxu0
    %v1777 = vadd.f32 %v1649, %v1776
    %v1778 = vpop.f32.mrf.mxu0
    %1779 = vdwg.mxu0
    %vm1780 = vcmask 7168
    %1781 = vst.msk [vmem:[%s12] sm:$0xff] %vm1780, %v1742
    %1782 = vst.msk [vmem:[%s12 + $0x8] sm:$0xff] %vm1780, %v1747
    %1783 = vst.msk [vmem:[%s12 + $0x10] sm:$0xff] %vm1780, %v1752
    %1784 = vst.msk [vmem:[%s12 + $0x18] sm:$0xff] %vm1780, %v1757
    %1785 = vst.msk [vmem:[%s12 + $0x20] sm:$0xff] %vm1780, %v1762
    %1786 = vst.msk [vmem:[%s12 + $0x28] sm:$0xff] %vm1780, %v1767
    %1787 = vst.msk [vmem:[%s12 + $0x30] sm:$0xff] %vm1780, %v1772
    %1788 = vst.msk [vmem:[%s12 + $0x38] sm:$0xff] %vm1780, %v1777
    // Predicated region
    $region70: #{tpu_custom_call.1} parent=1 // pred_check
      _
    $region71: #{tpu_custom_call.1} parent=1 // pred_check_branch
      %1790 = sbr.rel (0) target = $region73
    $region72: #{tpu_custom_call.1} parent=1 // pred_region
      _
    $region73: #{tpu_custom_call.1} parent=1 // pred_fallthru
      _
    // Predicated region
    $region74: #{tpu_custom_call.1} parent=1 // pred_check
      _
    $region75: #{tpu_custom_call.1} parent=1 // pred_check_branch
      %1792 = sbr.rel (0) target = $region77
    $region76: #{tpu_custom_call.1} parent=1 // pred_region
      _
    $region77: #{tpu_custom_call.1} parent=1 // pred_fallthru
      _
    // Predicated region
    $region78: #{tpu_custom_call.1} parent=1 // pred_check
      _
    $region79: #{tpu_custom_call.1} parent=1 // pred_check_branch
      %1794 = sbr.rel (0) target = $region81
    $region80: #{tpu_custom_call.1} parent=1 // pred_region
      %s1796 = ssub.s32 256, 256
      %1797 = vsyncadd [#allocation6], %s1796
      %s1798 = sshll.u32 [#allocation15], 4
      %s1799 = int_to_ptr.vmem [resolvable:$true] %s1798
      %1804 = dma.vmem_to_hbm [thread:$0]  %s1799, 256, %s13, [#allocation6], 128, 128, 8
    $region81: #{tpu_custom_call.1} parent=1 // pred_fallthru
      _
    // Predicated region
    $region82: #{tpu_custom_call.1} parent=1 // pred_check
      _
    $region83: #{tpu_custom_call.1} parent=1 // pred_check_branch
      %1806 = sbr.rel (0) target = $region85
    $region84: #{tpu_custom_call.1} parent=1 // pred_region
      %s1808 = ssub.s32 256, 256
      %1809 = vsyncadd [#allocation17], %s1808
      %s1810 = sshll.u32 [#allocation16], 4
      %s1811 = int_to_ptr.vmem [resolvable:$true] %s1810
      %1816 = dma.vmem_to_hbm [thread:$0]  %s1811, 256, %s14, [#allocation17], 128, 128, 8
    $region85: #{tpu_custom_call.1} parent=1 // pred_fallthru
      _
    // Predicated region
    $region86: #{tpu_custom_call.1} parent=1 // pred_check
      _
    $region87: #{tpu_custom_call.1} parent=1 // pred_check_branch
      %1818 = sbr.rel (0) target = $region89
    $region88: #{tpu_custom_call.1} parent=1 // pred_region
      _
    $region89: #{tpu_custom_call.1} parent=1 // pred_fallthru
      _
    // Predicated region
    $region90: #{tpu_custom_call.1} parent=1 // pred_check
      _
    $region91: #{tpu_custom_call.1} parent=1 // pred_check_branch
      %1820 = sbr.rel (0) target = $region93
    $region92: #{tpu_custom_call.1} parent=1 // pred_region
      _
    $region93: #{tpu_custom_call.1} parent=1 // pred_fallthru
      _
    // Predicated region
    $region94: #{tpu_custom_call.1} parent=1 // pred_check
      _
    $region95: #{tpu_custom_call.1} parent=1 // pred_check_branch
      %1822 = sbr.rel (0) target = $region97
    $region96: #{tpu_custom_call.1} parent=1 // pred_region
      %1823 = dma.done [#allocation6], 256
    $region97: #{tpu_custom_call.1} parent=1 // pred_fallthru
      _
    // Predicated region
    $region98: #{tpu_custom_call.1} parent=1 // pred_check
      _
    $region99: #{tpu_custom_call.1} parent=1 // pred_check_branch
      %1825 = sbr.rel (0) target = $region101
    $region100: #{tpu_custom_call.1} parent=1 // pred_region
      %1826 = dma.done [#allocation17], 256
    $region101: #{tpu_custom_call.1} parent=1 // pred_fallthru
      _
    %1827 = vsyncpa [#allocation5], 1
    %1828 = vsyncpa [#allocation8], 1
    %1829 = vsyncpa [#allocation11], 1
    %1830 = vsyncpa [#allocation14], 1
    %1831 = vsyncpa [#allocation6], 1
    %1832 = vsyncpa [#allocation17], 1

</llo_original>
